<compile_context>
chip_gen: v5e
topology: v5e:2x2
jax: 0.10.0
libtpu: 0.0.40
codegen_flags: <defaults>
</compile_context>

<pallas_src>
import jax
import jax.numpy as jnp
from jax.experimental import pallas as pl
from jax.experimental.pallas import tpu as pltpu  # noqa: F401  (TPU backend)

# ----------------------------- configuration --------------------------------
# The classifier hard-codes an input width of 672 = T * in_features, so the
# window count T and in_features must multiply to 672.  Window size w = 8.
IN_FEATURES = 28
CLASSES = 5
W = 8                        # sliding-window size (module default is 128)
STEP = W // 2                # stride = w // 2
T = 24                       # number of windows; T * IN_FEATURES == 672
B = 2
L = W + (T - 1) * STEP       # sequence length = 100
assert T * IN_FEATURES == 672 and L % STEP == 0

# logical (torch) dims
D0 = IN_FEATURES * W         # 224  backbone linear-1 in/out
D2 = D0 // 4                 # 56   backbone linear-2 out
D3 = IN_FEATURES * 4         # 112  backbone linear-3 out
D4 = IN_FEATURES             # 28   backbone linear-4 out
DC = 672                     # classifier input
DH = IN_FEATURES * 4         # 112  classifier hidden

# padded (lane-friendly) dims
LANE = 128
CP = 32                      # channels padded 28 -> 32
HALF = STEP * CP             # 128: one half-window slab
D1P = 256                    # 224 -> 256
D2P = 128                    # 56  -> 128
D3P = 128                    # 112 -> 128
D4P = 32                     # 28  -> 32
DHP = 128                    # 112 -> 128
CLS_P = 128                  # classes 5 -> 128 (lane-dense logits)
REP = LANE // D4P            # 4 replicas of layer-4 output per 128 lanes
NBLK = T // REP              # 6 lane-blocks to cover all T windows
assert T % REP == 0 and B == 2  # (t = r % T trick below assumes B == 2)

# packed parameter buffers: row offsets
R_W1, R_B1, R_B2, R_B3, R_B4, R_CB1, R_CB2 = 0, 256, 257, 258, 259, 260, 261
PA_ROWS = 264                                     # buffer A: width 256
R_W2, R_W3, R_W4, R_CW1, R_CW2 = 0, 256, 384, 512, 1280
PB_ROWS = 1408                                    # buffer B: width 128

LEAKY_SLOPE = 0.01           # nn.LeakyReLU default
NEG_INF = -1e30              # masks padded logit lanes (exp underflows to 0)


def _leaky_relu(x):
    return jnp.where(x > 0, x, LEAKY_SLOPE * x)


# ------------------------------- kernel --------------------------------------
def slid_mlp_kernel(xw_ref, pa_ref, pb_ref, o_ref):
    """Fused SlidMLP forward: backbone MLP + window flatten + classifier + softmax."""
    f32 = jnp.float32
    xw = xw_ref[...]                                        # (B*T, 256) full windows

    # Static views into the two packed parameter buffers (zero-cost slices).
    w1 = pa_ref[R_W1:R_W1 + D1P, :]                         # (256, 256)
    b1 = pa_ref[R_B1:R_B1 + 1, :]                           # (1, 256)
    b2 = pa_ref[R_B2:R_B2 + 1, 0:D2P]                       # (1, 128)
    b3 = pa_ref[R_B3:R_B3 + 1, 0:D3P]                       # (1, 128)
    b4r = pa_ref[R_B4:R_B4 + 1, 0:LANE]                     # (1, 128) = b4 tiled 4x
    cb1 = pa_ref[R_CB1:R_CB1 + 1, 0:DHP]                    # (1, 128)
    cb2 = pa_ref[R_CB2:R_CB2 + 1, 0:CLS_P]                  # (1, 128) (-1e30 in pads)

    w2 = pb_ref[R_W2:R_W2 + D1P, :]                         # (256, 128)
    w3 = pb_ref[R_W3:R_W3 + D2P, :]                         # (128, 128)
    w4r = pb_ref[R_W4:R_W4 + D3P, :]                        # (128, 128) = w4 tiled 4x
    cw1f = pb_ref[R_CW1:R_CW1 + T * D4P, :]                 # (768, 128)
    cw2 = pb_ref[R_CW2:R_CW2 + DHP, :]                      # (128, 128)

    # ---- backbone (Dropout = identity in eval mode) ----
    h = _leaky_relu(jnp.dot(xw, w1, preferred_element_type=f32) + b1)            # (48, 256)
    h = _leaky_relu(jnp.dot(h, w2, preferred_element_type=f32) + b2)             # (48, 128)
    h = jnp.maximum(jnp.dot(h, w3, preferred_element_type=f32) + b3, 0.0)        # (48, 128)
    # layer-4 weight is replicated 4x along columns -> x4[r, c] = f[r, c % 32]
    x4 = jnp.maximum(jnp.dot(h, w4r, preferred_element_type=f32) + b4r, 0.0)     # (48, 128)

    # ---- flatten (b, t, i) -> (b, t*i) without an exotic reshape ----
    # Replicate to (48, 768): column c holds f[r, c % 32].
    x_rep = jnp.concatenate([x4] * NBLK, axis=1)                                 # (48, 768)
    # Keep only each row's own window block (t = r % T; B == 2).
    r_idx = jax.lax.broadcasted_iota(jnp.int32, (B * T, T * D4P), 0)
    c_idx = jax.lax.broadcasted_iota(jnp.int32, (B * T, T * D4P), 1)
    t_of_r = jnp.where(r_idx >= T, r_idx - T, r_idx)
    lo = t_of_r * D4P
    x_sel = jnp.where((c_idx >= lo) & (c_idx < lo + D4P), x_rep, 0.0)            # (48, 768)
    # Sum the 24 masked rows of each batch with one tiny ones-matmul.
    b_idx = jax.lax.broadcasted_iota(jnp.int32, (B, B * T), 0)
    g_idx = jax.lax.broadcasted_iota(jnp.int32, (B, B * T), 1)
    gsum = jnp.where((g_idx >= b_idx * T) & (g_idx < (b_idx + 1) * T), 1.0, 0.0)  # (2, 48)
    f2 = jnp.dot(gsum, x_sel, preferred_element_type=f32)                        # (2, 768)

    # ---- classifier (single K=768 matmul) + lane-dense softmax ----
    hc = jnp.maximum(jnp.dot(f2, cw1f, preferred_element_type=f32) + cb1, 0.0)   # (2, 128)
    logits = jnp.dot(hc, cw2, preferred_element_type=f32) + cb2                  # (2, 128)
    m = jnp.max(logits, axis=-1, keepdims=True)
    e = jnp.exp(logits - m)                       # padded lanes: exp(-1e30 - m) == 0 exactly
    o_ref[...] = (e / jnp.sum(e, axis=-1, keepdims=True)).astype(o_ref.dtype)


# ------------------------------- wrapper --------------------------------------
def slid_mlp_forward(x, pp):
    """x: (B, L, IN_FEATURES) f32; pp: packed params from prepare_pallas_params."""
    # Cheap host-side glue: pad channels 28->32, view as half-window slabs, and
    # duplicate the overlapping halves so each row is one full 256-wide window.
    xp = jnp.pad(x, ((0, 0), (0, 0), (0, CP - IN_FEATURES)))          # (B, L, 32)
    xh = xp.reshape(B, L // STEP, HALF)                               # (B, 25, 128)
    xw = jnp.concatenate([xh[:, :T, :], xh[:, 1:T + 1, :]], axis=-1)  # (B, T, 256)
    xw = xw.reshape(B * T, 2 * HALF)                                  # (48, 256)

    def full(shape):
        zero = (0,) * len(shape)
        return pl.BlockSpec(shape, lambda zero=zero: zero)

    out = pl.pallas_call(
        slid_mlp_kernel,
        out_shape=jax.ShapeDtypeStruct((B, CLS_P), jnp.float32),
        grid=(),                       # single-shot: ~10 MFLOP, latency-bound
        in_specs=[
            full((B * T, 2 * HALF)),   # activations
            full((PA_ROWS, D1P)),      # packed params, 256-wide
            full((PB_ROWS, LANE)),     # packed params, 128-wide
        ],
        out_specs=full((B, CLS_P)),
        # NOTE(v7x): grid=() uses one TensorCore; for larger batches add a
        # leading "parallel" grid axis over row tiles (free headroom, per review).
    )(xw, pp["pa"], pp["pb"])
    return out[:, :CLASSES]


# ------------------------- params (torch layout) -------------------------------
def init_params(key):
    def linear(k, fan_in, fan_out):
        kw, kb = jax.random.split(k)
        w = jax.random.normal(kw, (fan_in, fan_out), jnp.float32) / jnp.sqrt(fan_in)
        b = jax.random.normal(kb, (1, fan_out), jnp.float32) * 0.01
        return w, b

    ks = jax.random.split(key, 6)
    p = {}
    p["bw1"], p["bb1"] = linear(ks[0], D0, D0)     # rows indexed by (c*W + w) — torch flatten
    p["bw2"], p["bb2"] = linear(ks[1], D0, D2)
    p["bw3"], p["bb3"] = linear(ks[2], D2, D3)
    p["bw4"], p["bb4"] = linear(ks[3], D3, D4)
    p["cw1"], p["cb1"] = linear(ks[4], DC, DH)     # rows indexed by (t*IN_FEATURES + i)
    p["cw2"], p["cb2"] = linear(ks[5], DH, CLASSES)
    return p


def prepare_pallas_params(p):
    """One-time repack of torch-layout weights into two padded, packed buffers.

    Absorbs the window (w,c) flatten + channel padding into a row permutation of
    bw1, zero-pads hidden dims to lane-friendly sizes, replicates linear-4 4x
    along columns (for the in-kernel flatten trick), flattens the classifier's
    first weight to (768, 128), and packs everything into two contiguous f32
    buffers.  All pads are exact zeros (or -1e30 logit-bias masks), so the
    forward pass is numerically unchanged.
    """
    f32 = jnp.float32

    # backbone linear 1: padded input layout is [half | within-half step | channel(32)]
    pidx = jnp.arange(2 * HALF)
    half = pidx // HALF
    rem = pidx % HALF
    wl = rem // CP                      # within-half time step 0..3
    ch = rem % CP                       # padded channel 0..31
    w_full = half * STEP + wl           # window position 0..7
    src = ch * W + w_full               # torch row index = c*W + w
    valid = ch < IN_FEATURES
    w1 = jnp.where(valid[:, None], p["bw1"][jnp.clip(src, 0, D0 - 1), :], 0.0)   # (256, 224)
    w1 = jnp.pad(w1, ((0, 0), (0, D1P - D0))).astype(f32)                        # (256, 256)
    b1 = jnp.pad(p["bb1"], ((0, 0), (0, D1P - D0))).astype(f32)

    def pad2(w, rows_to, cols_to):
        r, c = w.shape
        return jnp.pad(w, ((0, rows_to - r), (0, cols_to - c))).astype(f32)

    w2 = pad2(p["bw2"], D1P, D2P); b2 = pad2(p["bb2"], 1, D2P)
    w3 = pad2(p["bw3"], D2P, D3P); b3 = pad2(p["bb3"], 1, D3P)
    w4 = pad2(p["bw4"], D3P, D4P); b4 = pad2(p["bb4"], 1, D4P)
    w4r = jnp.tile(w4, (1, REP))                         # (128, 128)
    b4r = jnp.tile(b4, (1, REP))                         # (1, 128)

    # classifier linear 1: 672 rows ordered (t, i) -> zero-pad i to 32 -> (768, 128)
    cw1 = p["cw1"].reshape(T, IN_FEATURES, DH)
    cw1 = jnp.pad(cw1, ((0, 0), (0, D4P - IN_FEATURES), (0, DHP - DH))).astype(f32)
    cw1f = cw1.reshape(T * D4P, DHP)                     # (768, 128)
    cb1 = pad2(p["cb1"], 1, DHP)
    cw2 = pad2(p["cw2"], DHP, CLS_P)                     # (128, 128), zero cols 5..127
    cb2 = jnp.full((1, CLS_P), NEG_INF, f32).at[0, :CLASSES].set(p["cb2"][0].astype(f32))

    # ---- pack into two contiguous buffers (3 input DMAs total incl. activations) ----
    pa = jnp.zeros((PA_ROWS, D1P), f32)
    pa = pa.at[R_W1:R_W1 + D1P, :].set(w1)
    pa = pa.at[R_B1, :].set(b1[0])
    pa = pa.at[R_B2, :D2P].set(b2[0])
    pa = pa.at[R_B3, :D3P].set(b3[0])
    pa = pa.at[R_B4, :LANE].set(b4r[0])
    pa = pa.at[R_CB1, :DHP].set(cb1[0])
    pa = pa.at[R_CB2, :CLS_P].set(cb2[0])

    pb = jnp.zeros((PB_ROWS, LANE), f32)
    pb = pb.at[R_W2:R_W2 + D1P, :].set(w2)
    pb = pb.at[R_W3:R_W3 + D2P, :].set(w3)
    pb = pb.at[R_W4:R_W4 + D3P, :].set(w4r)
    pb = pb.at[R_CW1:R_CW1 + T * D4P, :].set(cw1f)
    pb = pb.at[R_CW2:R_CW2 + DHP, :].set(cw2)

    return dict(pa=pa, pb=pb)


# ------------------------------ reference -------------------------------------
def unfold_and_flatten(x):
    """torch unfold(1, W, STEP) -> (B,T,C,W); einops flatten -> (B,T,C*W)."""
    starts = jnp.arange(T) * STEP
    idx = starts[:, None] + jnp.arange(W)[None, :]     # (T, W)
    windows = x[:, idx, :]                             # (B, T, W, C)
    windows = jnp.transpose(windows, (0, 1, 3, 2))     # (B, T, C, W)
    return windows.reshape(B, T, D0)


def reference_forward(x, p):
    hi = jax.lax.Precision.HIGHEST
    xw = unfold_and_flatten(x).reshape(B * T, D0)
    h = _leaky_relu(jnp.dot(xw, p["bw1"], precision=hi) + p["bb1"])
    h = _leaky_relu(jnp.dot(h, p["bw2"], precision=hi) + p["bb2"])
    h = jnp.maximum(jnp.dot(h, p["bw3"], precision=hi) + p["bb3"], 0.0)
    h = jnp.maximum(jnp.dot(h, p["bw4"], precision=hi) + p["bb4"], 0.0)
    h = h.reshape(B, T * IN_FEATURES)
    h = jnp.maximum(jnp.dot(h, p["cw1"], precision=hi) + p["cb1"], 0.0)
    logits = jnp.dot(h, p["cw2"], precision=hi) + p["cb2"]
    return jax.nn.softmax(logits, axis=-1)


# --------------------------------- main ---------------------------------------
if __name__ == "__main__":
    key = jax.random.PRNGKey(0)
    kx, kp = jax.random.split(key)
    x = jax.random.normal(kx, (B, L, IN_FEATURES), dtype=jnp.float32)
    params = init_params(kp)
    pparams = prepare_pallas_params(params)        # one-time, init-side cost

    fwd = jax.jit(slid_mlp_forward)
    out = jax.block_until_ready(fwd(x, pparams))

    assert out.shape == (B, CLASSES)
    ref = reference_forward(x, params)
    assert jnp.allclose(out, ref, atol=5e-3, rtol=5e-3), "mismatch vs reference"
    assert jnp.allclose(jnp.sum(out, axis=-1), 1.0, atol=1e-4), "softmax rows must sum to 1"

    print("KERNEL_OK")
</pallas_src>

<mosaic_0001>
module attributes {stable_mosaic.version = 11 : i64} {
  func.func @slid_mlp_kernel(%arg0: memref<48x256xf32, #tpu.memory_space<vmem>>, %arg1: memref<264x256xf32, #tpu.memory_space<vmem>>, %arg2: memref<1408x128xf32, #tpu.memory_space<vmem>>, %arg3: memref<2x128xf32, #tpu.memory_space<vmem>>) attributes {dimension_semantics = [], scalar_prefetch = 0 : i64, scratch_operands = 0 : i64, tpu.core_type = #tpu.core_type<tc>} {
    %c0 = arith.constant 0 : index
    %c0_0 = arith.constant 0 : index
    %0 = vector.load %arg0[%c0, %c0_0] : memref<48x256xf32, #tpu.memory_space<vmem>>, vector<48x256xf32>
    %c0_1 = arith.constant 0 : index
    %c0_2 = arith.constant 0 : index
    %1 = vector.load %arg1[%c0_1, %c0_2] : memref<264x256xf32, #tpu.memory_space<vmem>>, vector<256x256xf32>
    %c256 = arith.constant 256 : index
    %c0_3 = arith.constant 0 : index
    %2 = vector.load %arg1[%c256, %c0_3] : memref<264x256xf32, #tpu.memory_space<vmem>>, vector<1x256xf32>
    %c257 = arith.constant 257 : index
    %c0_4 = arith.constant 0 : index
    %3 = vector.load %arg1[%c257, %c0_4] : memref<264x256xf32, #tpu.memory_space<vmem>>, vector<1x128xf32>
    %c258 = arith.constant 258 : index
    %c0_5 = arith.constant 0 : index
    %4 = vector.load %arg1[%c258, %c0_5] : memref<264x256xf32, #tpu.memory_space<vmem>>, vector<1x128xf32>
    %c259 = arith.constant 259 : index
    %c0_6 = arith.constant 0 : index
    %5 = vector.load %arg1[%c259, %c0_6] : memref<264x256xf32, #tpu.memory_space<vmem>>, vector<1x128xf32>
    %c260 = arith.constant 260 : index
    %c0_7 = arith.constant 0 : index
    %6 = vector.load %arg1[%c260, %c0_7] : memref<264x256xf32, #tpu.memory_space<vmem>>, vector<1x128xf32>
    %c261 = arith.constant 261 : index
    %c0_8 = arith.constant 0 : index
    %7 = vector.load %arg1[%c261, %c0_8] : memref<264x256xf32, #tpu.memory_space<vmem>>, vector<1x128xf32>
    %c0_9 = arith.constant 0 : index
    %c0_10 = arith.constant 0 : index
    %8 = vector.load %arg2[%c0_9, %c0_10] : memref<1408x128xf32, #tpu.memory_space<vmem>>, vector<256x128xf32>
    %c256_11 = arith.constant 256 : index
    %c0_12 = arith.constant 0 : index
    %9 = vector.load %arg2[%c256_11, %c0_12] : memref<1408x128xf32, #tpu.memory_space<vmem>>, vector<128x128xf32>
    %c384 = arith.constant 384 : index
    %c0_13 = arith.constant 0 : index
    %10 = vector.load %arg2[%c384, %c0_13] : memref<1408x128xf32, #tpu.memory_space<vmem>>, vector<128x128xf32>
    %c512 = arith.constant 512 : index
    %c0_14 = arith.constant 0 : index
    %11 = vector.load %arg2[%c512, %c0_14] : memref<1408x128xf32, #tpu.memory_space<vmem>>, vector<768x128xf32>
    %c1280 = arith.constant 1280 : index
    %c0_15 = arith.constant 0 : index
    %12 = vector.load %arg2[%c1280, %c0_15] : memref<1408x128xf32, #tpu.memory_space<vmem>>, vector<128x128xf32>
    %cst = arith.constant dense<0.000000e+00> : vector<48x256xf32>
    %13 = tpu.matmul %0, %1, %cst {dimension_numbers = #tpu.dot_dimension_numbers<[1], [0], [0], [1], [0, 0, 1, 1], [], []>} : vector<48x256xf32>, vector<256x256xf32>, vector<48x256xf32> -> vector<48x256xf32>
    %14 = vector.broadcast %2 : vector<1x256xf32> to vector<48x256xf32>
    %15 = arith.addf %13, %14 : vector<48x256xf32>
    %cst_16 = arith.constant 0.000000e+00 : f32
    %16 = vector.broadcast %cst_16 : f32 to vector<48x256xf32>
    %17 = arith.cmpf ogt, %15, %16 : vector<48x256xf32>
    %cst_17 = arith.constant 0.00999999977 : f32
    %18 = vector.broadcast %cst_17 : f32 to vector<48x256xf32>
    %19 = arith.mulf %18, %15 : vector<48x256xf32>
    %20 = arith.select %17, %15, %19 : vector<48x256xi1>, vector<48x256xf32>
    %cst_18 = arith.constant dense<0.000000e+00> : vector<48x128xf32>
    %21 = tpu.matmul %20, %8, %cst_18 {dimension_numbers = #tpu.dot_dimension_numbers<[1], [0], [0], [1], [0, 0, 1, 1], [], []>} : vector<48x256xf32>, vector<256x128xf32>, vector<48x128xf32> -> vector<48x128xf32>
    %22 = vector.broadcast %3 : vector<1x128xf32> to vector<48x128xf32>
    %23 = arith.addf %21, %22 : vector<48x128xf32>
    %cst_19 = arith.constant 0.000000e+00 : f32
    %24 = vector.broadcast %cst_19 : f32 to vector<48x128xf32>
    %25 = arith.cmpf ogt, %23, %24 : vector<48x128xf32>
    %cst_20 = arith.constant 0.00999999977 : f32
    %26 = vector.broadcast %cst_20 : f32 to vector<48x128xf32>
    %27 = arith.mulf %26, %23 : vector<48x128xf32>
    %28 = arith.select %25, %23, %27 : vector<48x128xi1>, vector<48x128xf32>
    %cst_21 = arith.constant dense<0.000000e+00> : vector<48x128xf32>
    %29 = tpu.matmul %28, %9, %cst_21 {dimension_numbers = #tpu.dot_dimension_numbers<[1], [0], [0], [1], [0, 0, 1, 1], [], []>} : vector<48x128xf32>, vector<128x128xf32>, vector<48x128xf32> -> vector<48x128xf32>
    %30 = vector.broadcast %4 : vector<1x128xf32> to vector<48x128xf32>
    %31 = arith.addf %29, %30 : vector<48x128xf32>
    %cst_22 = arith.constant 0.000000e+00 : f32
    %32 = vector.broadcast %cst_22 : f32 to vector<48x128xf32>
    %33 = arith.maximumf %31, %32 : vector<48x128xf32>
    %cst_23 = arith.constant dense<0.000000e+00> : vector<48x128xf32>
    %34 = tpu.matmul %33, %10, %cst_23 {dimension_numbers = #tpu.dot_dimension_numbers<[1], [0], [0], [1], [0, 0, 1, 1], [], []>} : vector<48x128xf32>, vector<128x128xf32>, vector<48x128xf32> -> vector<48x128xf32>
    %35 = vector.broadcast %5 : vector<1x128xf32> to vector<48x128xf32>
    %36 = arith.addf %34, %35 : vector<48x128xf32>
    %cst_24 = arith.constant 0.000000e+00 : f32
    %37 = vector.broadcast %cst_24 : f32 to vector<48x128xf32>
    %38 = arith.maximumf %36, %37 : vector<48x128xf32>
    %39 = tpu.concatenate %38, %38, %38, %38, %38, %38 in 1 : vector<48x128xf32>, vector<48x128xf32>, vector<48x128xf32>, vector<48x128xf32>, vector<48x128xf32>, vector<48x128xf32> -> vector<48x768xf32>
    %40 = tpu.iota {dimensions = array<i32: 0>} : vector<48x768xi32>
    %41 = tpu.iota {dimensions = array<i32: 1>} : vector<48x768xi32>
    %c24_i32 = arith.constant 24 : i32
    %42 = vector.broadcast %c24_i32 : i32 to vector<48x768xi32>
    %43 = arith.cmpi sge, %40, %42 : vector<48x768xi32>
    %c24_i32_25 = arith.constant 24 : i32
    %44 = vector.broadcast %c24_i32_25 : i32 to vector<48x768xi32>
    %45 = arith.subi %40, %44 : vector<48x768xi32>
    %46 = arith.select %43, %45, %40 : vector<48x768xi1>, vector<48x768xi32>
    %c32_i32 = arith.constant 32 : i32
    %47 = vector.broadcast %c32_i32 : i32 to vector<48x768xi32>
    %48 = arith.muli %46, %47 : vector<48x768xi32>
    %49 = arith.cmpi sge, %41, %48 : vector<48x768xi32>
    %c32_i32_26 = arith.constant 32 : i32
    %50 = vector.broadcast %c32_i32_26 : i32 to vector<48x768xi32>
    %51 = arith.addi %48, %50 : vector<48x768xi32>
    %52 = arith.cmpi slt, %41, %51 : vector<48x768xi32>
    %53 = arith.andi %49, %52 : vector<48x768xi1>
    %cst_27 = arith.constant 0.000000e+00 : f32
    %54 = vector.broadcast %cst_27 : f32 to vector<48x768xf32>
    %55 = arith.select %53, %39, %54 : vector<48x768xi1>, vector<48x768xf32>
    %56 = tpu.iota {dimensions = array<i32: 0>} : vector<2x48xi32>
    %57 = tpu.iota {dimensions = array<i32: 1>} : vector<2x48xi32>
    %c24_i32_28 = arith.constant 24 : i32
    %58 = vector.broadcast %c24_i32_28 : i32 to vector<2x48xi32>
    %59 = arith.muli %56, %58 : vector<2x48xi32>
    %60 = arith.cmpi sge, %57, %59 : vector<2x48xi32>
    %c1_i32 = arith.constant 1 : i32
    %61 = vector.broadcast %c1_i32 : i32 to vector<2x48xi32>
    %62 = arith.addi %56, %61 : vector<2x48xi32>
    %c24_i32_29 = arith.constant 24 : i32
    %63 = vector.broadcast %c24_i32_29 : i32 to vector<2x48xi32>
    %64 = arith.muli %62, %63 : vector<2x48xi32>
    %65 = arith.cmpi slt, %57, %64 : vector<2x48xi32>
    %66 = arith.andi %60, %65 : vector<2x48xi1>
    %cst_30 = arith.constant 1.000000e+00 : f32
    %cst_31 = arith.constant 0.000000e+00 : f32
    %67 = vector.broadcast %cst_30 : f32 to vector<2x48xf32>
    %68 = vector.broadcast %cst_31 : f32 to vector<2x48xf32>
    %69 = arith.select %66, %67, %68 : vector<2x48xi1>, vector<2x48xf32>
    %cst_32 = arith.constant dense<0.000000e+00> : vector<2x768xf32>
    %70 = tpu.matmul %69, %55, %cst_32 {dimension_numbers = #tpu.dot_dimension_numbers<[1], [0], [0], [1], [0, 0, 1, 1], [], []>} : vector<2x48xf32>, vector<48x768xf32>, vector<2x768xf32> -> vector<2x768xf32>
    %cst_33 = arith.constant dense<0.000000e+00> : vector<2x128xf32>
    %71 = tpu.matmul %70, %11, %cst_33 {dimension_numbers = #tpu.dot_dimension_numbers<[1], [0], [0], [1], [0, 0, 1, 1], [], []>} : vector<2x768xf32>, vector<768x128xf32>, vector<2x128xf32> -> vector<2x128xf32>
    %72 = vector.broadcast %6 : vector<1x128xf32> to vector<2x128xf32>
    %73 = arith.addf %71, %72 : vector<2x128xf32>
    %cst_34 = arith.constant 0.000000e+00 : f32
    %74 = vector.broadcast %cst_34 : f32 to vector<2x128xf32>
    %75 = arith.maximumf %73, %74 : vector<2x128xf32>
    %cst_35 = arith.constant dense<0.000000e+00> : vector<2x128xf32>
    %76 = tpu.matmul %75, %12, %cst_35 {dimension_numbers = #tpu.dot_dimension_numbers<[1], [0], [0], [1], [0, 0, 1, 1], [], []>} : vector<2x128xf32>, vector<128x128xf32>, vector<2x128xf32> -> vector<2x128xf32>
    %77 = vector.broadcast %7 : vector<1x128xf32> to vector<2x128xf32>
    %78 = arith.addf %76, %77 : vector<2x128xf32>
    %cst_36 = arith.constant dense<0xFF800000> : vector<2xf32>
    %79 = vector.multi_reduction <maximumf>, %78, %cst_36 [1] : vector<2x128xf32> to vector<2xf32>
    %80 = vector.shape_cast %79 : vector<2xf32> to vector<2x1xf32>
    %81 = vector.broadcast %80 : vector<2x1xf32> to vector<2x128xf32>
    %82 = arith.subf %78, %81 : vector<2x128xf32>
    %83 = math.exp %82 : vector<2x128xf32>
    %cst_37 = arith.constant dense<0.000000e+00> : vector<2xf32>
    %84 = vector.multi_reduction <add>, %83, %cst_37 [1] : vector<2x128xf32> to vector<2xf32>
    %85 = vector.shape_cast %84 : vector<2xf32> to vector<2x1xf32>
    %86 = vector.broadcast %85 : vector<2x1xf32> to vector<2x128xf32>
    %87 = arith.divf %83, %86 : vector<2x128xf32>
    %c0_38 = arith.constant 0 : index
    %c0_39 = arith.constant 0 : index
    %88 = vector.load %arg3[%c0_38, %c0_39] : memref<2x128xf32, #tpu.memory_space<vmem>>, vector<2x128xf32>
    tpu.vector_store %arg3[%c0_38, %c0_39], %87 {strides = array<i32>} : memref<2x128xf32, #tpu.memory_space<vmem>>, vector<2x128xf32>,
    return
  }
}

</mosaic_0001>

<llo_original>
// kernel: slid_mlp_forward.1
$region0: #{slid_mlp_forward.1}
  #allocation0 [shape = 'u32[]', space=smem, size = 0x4, offset = 0x4, fixed_abs, tag = 'smem constant byte address 0x4 - core index']
  #allocation1 [shape = 'u32[72,128]{1,0:T(1,128)}', space=vmem, size = 0x9000, scoped, tag = 'internal scratch']
  %s0 = inlined_call_operand.vmem [shape: f32[48,256], index: 0, kind: input, shape index: {}]
  %s1 = inlined_call_operand.vmem [shape: f32[264,256], index: 1, kind: input, shape index: {}]
  %s2 = inlined_call_operand.hbm [shape: f32[1408,128], index: 2, kind: input, shape index: {}]
  %s3 = inlined_call_operand.hbm [shape: f32[2,128], index: 3, kind: output, shape index: {}]
  %s4 = sld [smem:[#allocation0]]
  $region26: #{slid_mlp_forward.1} parent=0
    _
  %s6 = ssub.s32 1, %s4
  %s7 = scalar_select 0, %s6, %s4
  $region1: #{slid_mlp_forward.1} parent=0
    #allocation2 [shape = 'u8[720896]{0}', space=vmem, size = 0xb0000, scoped, tag = 'input window, operand 2, single buffered']
    #allocation3 [shape = 's32[1]{0}', space=sflag, size = 0x4, scoped, tag = 'scoped memory for slid_mlp_forward.1']
    #allocation4 [shape = 's32[1]{0}', space=sflag, size = 0x4, scoped, tag = 'scoped memory for slid_mlp_forward.1']
    #allocation5 [shape = 'u8[1024]{0}', space=vmem, size = 0x400, scoped, tag = 'output window, operand 0, single buffered']
    %8 = vsyncpa [#allocation3], 0
    %9 = vsyncpa [#allocation4], 0
    // Predicated region
    $region2: #{slid_mlp_forward.1} parent=1 // pred_check
      _
    $region3: #{slid_mlp_forward.1} parent=1 // pred_check_branch
      %11 = sbr.rel (0) target = $region5
    $region4: #{slid_mlp_forward.1} parent=1 // pred_region
      _
    $region5: #{slid_mlp_forward.1} parent=1 // pred_fallthru
      _
    // Predicated region
    $region6: #{slid_mlp_forward.1} parent=1 // pred_check
      _
    $region7: #{slid_mlp_forward.1} parent=1 // pred_check_branch
      %13 = sbr.rel (0) target = $region9
    $region8: #{slid_mlp_forward.1} parent=1 // pred_region
      _
    $region9: #{slid_mlp_forward.1} parent=1 // pred_fallthru
      _
    // Predicated region
    $region10: #{slid_mlp_forward.1} parent=1 // pred_check
      _
    $region11: #{slid_mlp_forward.1} parent=1 // pred_check_branch
      %15 = sbr.rel (0) target = $region13
    $region12: #{slid_mlp_forward.1} parent=1 // pred_region
      %17 = vsyncadd [#allocation3], 0
      %s18 = sshll.u32 %s2, 4
      %s19 = int_to_ptr.hbm [resolvable:$true] %s18
      %s20 = sshll.u32 [#allocation2], 4
      %s21 = int_to_ptr.vmem [resolvable:$true] %s20
      %26 = dma.hbm_to_vmem [thread:$0]  %s19, 22528, %s21, [#allocation3], 128, 128, 8
    $region13: #{slid_mlp_forward.1} parent=1 // pred_fallthru
      _
    // Predicated region
    $region14: #{slid_mlp_forward.1} parent=1 // pred_check
      _
    $region15: #{slid_mlp_forward.1} parent=1 // pred_check_branch
      %28 = sbr.rel (0) target = $region17
    $region16: #{slid_mlp_forward.1} parent=1 // pred_region
      %30 = dma.done [#allocation3], 22528
    $region17: #{slid_mlp_forward.1} parent=1 // pred_fallthru
      _
    %v31 = vld [vmem:[%s0] sm:$0xff]
    %v32 = vld [vmem:[%s0 + $0x8] sm:$0xff]
    %v33 = vld [vmem:[%s0 + $0x10] sm:$0xff]
    %v34 = vld [vmem:[%s0 + $0x18] sm:$0xff]
    %v35 = vld [vmem:[%s0 + $0x20] sm:$0xff]
    %v36 = vld [vmem:[%s0 + $0x28] sm:$0xff]
    %v37 = vld [vmem:[%s0 + $0x30] sm:$0xff]
    %v38 = vld [vmem:[%s0 + $0x38] sm:$0xff]
    %v39 = vld [vmem:[%s0 + $0x40] sm:$0xff]
    %v40 = vld [vmem:[%s0 + $0x48] sm:$0xff]
    %v41 = vld [vmem:[%s0 + $0x50] sm:$0xff]
    %v42 = vld [vmem:[%s0 + $0x58] sm:$0xff]
    %v43 = vld [vmem:[%s1] sm:$0xff]
    %v44 = vld [vmem:[%s1 + $0x8] sm:$0xff]
    %v45 = vld [vmem:[%s1 + $0x10] sm:$0xff]
    %v46 = vld [vmem:[%s1 + $0x18] sm:$0xff]
    %v47 = vld [vmem:[%s1 + $0x20] sm:$0xff]
    %v48 = vld [vmem:[%s1 + $0x28] sm:$0xff]
    %v49 = vld [vmem:[%s1 + $0x30] sm:$0xff]
    %v50 = vld [vmem:[%s1 + $0x38] sm:$0xff]
    %v51 = vld [vmem:[%s1 + $0x40] sm:$0xff]
    %v52 = vld [vmem:[%s1 + $0x48] sm:$0xff]
    %v53 = vld [vmem:[%s1 + $0x50] sm:$0xff]
    %v54 = vld [vmem:[%s1 + $0x58] sm:$0xff]
    %v55 = vld [vmem:[%s1 + $0x60] sm:$0xff]
    %v56 = vld [vmem:[%s1 + $0x68] sm:$0xff]
    %v57 = vld [vmem:[%s1 + $0x70] sm:$0xff]
    %v58 = vld [vmem:[%s1 + $0x78] sm:$0xff]
    %v59 = vld [vmem:[%s1 + $0x80] sm:$0xff]
    %v60 = vld [vmem:[%s1 + $0x88] sm:$0xff]
    %v61 = vld [vmem:[%s1 + $0x90] sm:$0xff]
    %v62 = vld [vmem:[%s1 + $0x98] sm:$0xff]
    %v63 = vld [vmem:[%s1 + $0xa0] sm:$0xff]
    %v64 = vld [vmem:[%s1 + $0xa8] sm:$0xff]
    %v65 = vld [vmem:[%s1 + $0xb0] sm:$0xff]
    %v66 = vld [vmem:[%s1 + $0xb8] sm:$0xff]
    %v67 = vld [vmem:[%s1 + $0xc0] sm:$0xff]
    %v68 = vld [vmem:[%s1 + $0xc8] sm:$0xff]
    %v69 = vld [vmem:[%s1 + $0xd0] sm:$0xff]
    %v70 = vld [vmem:[%s1 + $0xd8] sm:$0xff]
    %v71 = vld [vmem:[%s1 + $0xe0] sm:$0xff]
    %v72 = vld [vmem:[%s1 + $0xe8] sm:$0xff]
    %v73 = vld [vmem:[%s1 + $0xf0] sm:$0xff]
    %v74 = vld [vmem:[%s1 + $0xf8] sm:$0xff]
    %v75 = vld [vmem:[%s1 + $0x100] sm:$0xff]
    %v76 = vld [vmem:[%s1 + $0x108] sm:$0xff]
    %v77 = vld [vmem:[%s1 + $0x110] sm:$0xff]
    %v78 = vld [vmem:[%s1 + $0x118] sm:$0xff]
    %v79 = vld [vmem:[%s1 + $0x120] sm:$0xff]
    %v80 = vld [vmem:[%s1 + $0x128] sm:$0xff]
    %v81 = vld [vmem:[%s1 + $0x130] sm:$0xff]
    %v82 = vld [vmem:[%s1 + $0x138] sm:$0xff]
    %v83 = vld [vmem:[%s1 + $0x140] sm:$0xff]
    %v84 = vld [vmem:[%s1 + $0x148] sm:$0xff]
    %v85 = vld [vmem:[%s1 + $0x150] sm:$0xff]
    %v86 = vld [vmem:[%s1 + $0x158] sm:$0xff]
    %v87 = vld [vmem:[%s1 + $0x160] sm:$0xff]
    %v88 = vld [vmem:[%s1 + $0x168] sm:$0xff]
    %v89 = vld [vmem:[%s1 + $0x170] sm:$0xff]
    %v90 = vld [vmem:[%s1 + $0x178] sm:$0xff]
    %v91 = vld [vmem:[%s1 + $0x180] sm:$0xff]
    %v92 = vld [vmem:[%s1 + $0x188] sm:$0xff]
    %v93 = vld [vmem:[%s1 + $0x190] sm:$0xff]
    %v94 = vld [vmem:[%s1 + $0x198] sm:$0xff]
    %v95 = vld [vmem:[%s1 + $0x1a0] sm:$0xff]
    %v96 = vld [vmem:[%s1 + $0x1a8] sm:$0xff]
    %v97 = vld [vmem:[%s1 + $0x1b0] sm:$0xff]
    %v98 = vld [vmem:[%s1 + $0x1b8] sm:$0xff]
    %v99 = vld [vmem:[%s1 + $0x1c0] sm:$0xff]
    %v100 = vld [vmem:[%s1 + $0x1c8] sm:$0xff]
    %v101 = vld [vmem:[%s1 + $0x1d0] sm:$0xff]
    %v102 = vld [vmem:[%s1 + $0x1d8] sm:$0xff]
    %v103 = vld [vmem:[%s1 + $0x1e0] sm:$0xff]
    %v104 = vld [vmem:[%s1 + $0x1e8] sm:$0xff]
    %v105 = vld [vmem:[%s1 + $0x1f0] sm:$0xff]
    %v106 = vld [vmem:[%s1 + $0x1f8] sm:$0xff]
    %s107 = scalar_lea.vmem %s1, 512
    %v108 = vld [vmem:[%s107] ss:$8 sm:$0x3]
    %v109 = vld [vmem:[%s1 + $0x201] ss:$0 sm:$0xff]
    %v110 = vld [vmem:[%s1 + $0x202] ss:$0 sm:$0xff]
    %v111 = vld [vmem:[%s1 + $0x203] ss:$0 sm:$0xff]
    %v112 = vld [vmem:[%s1 + $0x204] ss:$0 sm:$0xff]
    %v113 = vld [vmem:[%s1 + $0x205] ss:$0 sm:$0xff]
    %v114 = vld [vmem:[#allocation2] sm:$0xff]
    %v115 = vld [vmem:[#allocation2 + $0x8] sm:$0xff]
    %v116 = vld [vmem:[#allocation2 + $0x10] sm:$0xff]
    %v117 = vld [vmem:[#allocation2 + $0x18] sm:$0xff]
    %v118 = vld [vmem:[#allocation2 + $0x20] sm:$0xff]
    %v119 = vld [vmem:[#allocation2 + $0x28] sm:$0xff]
    %v120 = vld [vmem:[#allocation2 + $0x30] sm:$0xff]
    %v121 = vld [vmem:[#allocation2 + $0x38] sm:$0xff]
    %v122 = vld [vmem:[#allocation2 + $0x40] sm:$0xff]
    %v123 = vld [vmem:[#allocation2 + $0x48] sm:$0xff]
    %v124 = vld [vmem:[#allocation2 + $0x50] sm:$0xff]
    %v125 = vld [vmem:[#allocation2 + $0x58] sm:$0xff]
    %v126 = vld [vmem:[#allocation2 + $0x60] sm:$0xff]
    %v127 = vld [vmem:[#allocation2 + $0x68] sm:$0xff]
    %v128 = vld [vmem:[#allocation2 + $0x70] sm:$0xff]
    %v129 = vld [vmem:[#allocation2 + $0x78] sm:$0xff]
    %v130 = vld [vmem:[#allocation2 + $0x80] sm:$0xff]
    %v131 = vld [vmem:[#allocation2 + $0x88] sm:$0xff]
    %v132 = vld [vmem:[#allocation2 + $0x90] sm:$0xff]
    %v133 = vld [vmem:[#allocation2 + $0x98] sm:$0xff]
    %v134 = vld [vmem:[#allocation2 + $0xa0] sm:$0xff]
    %v135 = vld [vmem:[#allocation2 + $0xa8] sm:$0xff]
    %v136 = vld [vmem:[#allocation2 + $0xb0] sm:$0xff]
    %v137 = vld [vmem:[#allocation2 + $0xb8] sm:$0xff]
    %v138 = vld [vmem:[#allocation2 + $0xc0] sm:$0xff]
    %v139 = vld [vmem:[#allocation2 + $0xc8] sm:$0xff]
    %v140 = vld [vmem:[#allocation2 + $0xd0] sm:$0xff]
    %v141 = vld [vmem:[#allocation2 + $0xd8] sm:$0xff]
    %v142 = vld [vmem:[#allocation2 + $0xe0] sm:$0xff]
    %v143 = vld [vmem:[#allocation2 + $0xe8] sm:$0xff]
    %v144 = vld [vmem:[#allocation2 + $0xf0] sm:$0xff]
    %v145 = vld [vmem:[#allocation2 + $0xf8] sm:$0xff]
    %v146 = vld [vmem:[#allocation2 + $0x100] sm:$0xff]
    %v147 = vld [vmem:[#allocation2 + $0x108] sm:$0xff]
    %v148 = vld [vmem:[#allocation2 + $0x110] sm:$0xff]
    %v149 = vld [vmem:[#allocation2 + $0x118] sm:$0xff]
    %v150 = vld [vmem:[#allocation2 + $0x120] sm:$0xff]
    %v151 = vld [vmem:[#allocation2 + $0x128] sm:$0xff]
    %v152 = vld [vmem:[#allocation2 + $0x130] sm:$0xff]
    %v153 = vld [vmem:[#allocation2 + $0x138] sm:$0xff]
    %v154 = vld [vmem:[#allocation2 + $0x140] sm:$0xff]
    %v155 = vld [vmem:[#allocation2 + $0x148] sm:$0xff]
    %v156 = vld [vmem:[#allocation2 + $0x150] sm:$0xff]
    %v157 = vld [vmem:[#allocation2 + $0x158] sm:$0xff]
    %v158 = vld [vmem:[#allocation2 + $0x160] sm:$0xff]
    %v159 = vld [vmem:[#allocation2 + $0x168] sm:$0xff]
    %v160 = vld [vmem:[#allocation2 + $0x170] sm:$0xff]
    %v161 = vld [vmem:[#allocation2 + $0x178] sm:$0xff]
    %v162 = vld [vmem:[#allocation2 + $0x180] sm:$0xff]
    %v163 = vld [vmem:[#allocation2 + $0x188] sm:$0xff]
    %v164 = vld [vmem:[#allocation2 + $0x190] sm:$0xff]
    %v165 = vld [vmem:[#allocation2 + $0x198] sm:$0xff]
    %v166 = vld [vmem:[#allocation2 + $0x1a0] sm:$0xff]
    %v167 = vld [vmem:[#allocation2 + $0x1a8] sm:$0xff]
    %v168 = vld [vmem:[#allocation2 + $0x1b0] sm:$0xff]
    %v169 = vld [vmem:[#allocation2 + $0x1b8] sm:$0xff]
    %v170 = vld [vmem:[#allocation2 + $0x1c0] sm:$0xff]
    %v171 = vld [vmem:[#allocation2 + $0x1c8] sm:$0xff]
    %v172 = vld [vmem:[#allocation2 + $0x1d0] sm:$0xff]
    %v173 = vld [vmem:[#allocation2 + $0x1d8] sm:$0xff]
    %v174 = vld [vmem:[#allocation2 + $0x1e0] sm:$0xff]
    %v175 = vld [vmem:[#allocation2 + $0x1e8] sm:$0xff]
    %v176 = vld [vmem:[#allocation2 + $0x1f0] sm:$0xff]
    %v177 = vld [vmem:[#allocation2 + $0x1f8] sm:$0xff]
    %v178 = vld [vmem:[#allocation2 + $0x200] sm:$0xff]
    %v179 = vld [vmem:[#allocation2 + $0x208] sm:$0xff]
    %v180 = vld [vmem:[#allocation2 + $0x210] sm:$0xff]
    %v181 = vld [vmem:[#allocation2 + $0x218] sm:$0xff]
    %v182 = vld [vmem:[#allocation2 + $0x220] sm:$0xff]
    %v183 = vld [vmem:[#allocation2 + $0x228] sm:$0xff]
    %v184 = vld [vmem:[#allocation2 + $0x230] sm:$0xff]
    %v185 = vld [vmem:[#allocation2 + $0x238] sm:$0xff]
    %v186 = vld [vmem:[#allocation2 + $0x240] sm:$0xff]
    %v187 = vld [vmem:[#allocation2 + $0x248] sm:$0xff]
    %v188 = vld [vmem:[#allocation2 + $0x250] sm:$0xff]
    %v189 = vld [vmem:[#allocation2 + $0x258] sm:$0xff]
    %v190 = vld [vmem:[#allocation2 + $0x260] sm:$0xff]
    %v191 = vld [vmem:[#allocation2 + $0x268] sm:$0xff]
    %v192 = vld [vmem:[#allocation2 + $0x270] sm:$0xff]
    %v193 = vld [vmem:[#allocation2 + $0x278] sm:$0xff]
    %v194 = vld [vmem:[#allocation2 + $0x280] sm:$0xff]
    %v195 = vld [vmem:[#allocation2 + $0x288] sm:$0xff]
    %v196 = vld [vmem:[#allocation2 + $0x290] sm:$0xff]
    %v197 = vld [vmem:[#allocation2 + $0x298] sm:$0xff]
    %v198 = vld [vmem:[#allocation2 + $0x2a0] sm:$0xff]
    %v199 = vld [vmem:[#allocation2 + $0x2a8] sm:$0xff]
    %v200 = vld [vmem:[#allocation2 + $0x2b0] sm:$0xff]
    %v201 = vld [vmem:[#allocation2 + $0x2b8] sm:$0xff]
    %v202 = vld [vmem:[#allocation2 + $0x2c0] sm:$0xff]
    %v203 = vld [vmem:[#allocation2 + $0x2c8] sm:$0xff]
    %v204 = vld [vmem:[#allocation2 + $0x2d0] sm:$0xff]
    %v205 = vld [vmem:[#allocation2 + $0x2d8] sm:$0xff]
    %v206 = vld [vmem:[#allocation2 + $0x2e0] sm:$0xff]
    %v207 = vld [vmem:[#allocation2 + $0x2e8] sm:$0xff]
    %v208 = vld [vmem:[#allocation2 + $0x2f0] sm:$0xff]
    %v209 = vld [vmem:[#allocation2 + $0x2f8] sm:$0xff]
    %v210 = vld [vmem:[#allocation2 + $0x300] sm:$0xff]
    %v211 = vld [vmem:[#allocation2 + $0x308] sm:$0xff]
    %v212 = vld [vmem:[#allocation2 + $0x310] sm:$0xff]
    %v213 = vld [vmem:[#allocation2 + $0x318] sm:$0xff]
    %v214 = vld [vmem:[#allocation2 + $0x320] sm:$0xff]
    %v215 = vld [vmem:[#allocation2 + $0x328] sm:$0xff]
    %v216 = vld [vmem:[#allocation2 + $0x330] sm:$0xff]
    %v217 = vld [vmem:[#allocation2 + $0x338] sm:$0xff]
    %v218 = vld [vmem:[#allocation2 + $0x340] sm:$0xff]
    %v219 = vld [vmem:[#allocation2 + $0x348] sm:$0xff]
    %v220 = vld [vmem:[#allocation2 + $0x350] sm:$0xff]
    %v221 = vld [vmem:[#allocation2 + $0x358] sm:$0xff]
    %v222 = vld [vmem:[#allocation2 + $0x360] sm:$0xff]
    %v223 = vld [vmem:[#allocation2 + $0x368] sm:$0xff]
    %v224 = vld [vmem:[#allocation2 + $0x370] sm:$0xff]
    %v225 = vld [vmem:[#allocation2 + $0x378] sm:$0xff]
    %v226 = vld [vmem:[#allocation2 + $0x380] sm:$0xff]
    %v227 = vld [vmem:[#allocation2 + $0x388] sm:$0xff]
    %v228 = vld [vmem:[#allocation2 + $0x390] sm:$0xff]
    %v229 = vld [vmem:[#allocation2 + $0x398] sm:$0xff]
    %v230 = vld [vmem:[#allocation2 + $0x3a0] sm:$0xff]
    %v231 = vld [vmem:[#allocation2 + $0x3a8] sm:$0xff]
    %v232 = vld [vmem:[#allocation2 + $0x3b0] sm:$0xff]
    %v233 = vld [vmem:[#allocation2 + $0x3b8] sm:$0xff]
    %v234 = vld [vmem:[#allocation2 + $0x3c0] sm:$0xff]
    %v235 = vld [vmem:[#allocation2 + $0x3c8] sm:$0xff]
    %v236 = vld [vmem:[#allocation2 + $0x3d0] sm:$0xff]
    %v237 = vld [vmem:[#allocation2 + $0x3d8] sm:$0xff]
    %v238 = vld [vmem:[#allocation2 + $0x3e0] sm:$0xff]
    %v239 = vld [vmem:[#allocation2 + $0x3e8] sm:$0xff]
    %v240 = vld [vmem:[#allocation2 + $0x3f0] sm:$0xff]
    %v241 = vld [vmem:[#allocation2 + $0x3f8] sm:$0xff]
    %v242 = vld [vmem:[#allocation2 + $0x400] sm:$0xff]
    %v243 = vld [vmem:[#allocation2 + $0x408] sm:$0xff]
    %v244 = vld [vmem:[#allocation2 + $0x410] sm:$0xff]
    %v245 = vld [vmem:[#allocation2 + $0x418] sm:$0xff]
    %v246 = vld [vmem:[#allocation2 + $0x420] sm:$0xff]
    %v247 = vld [vmem:[#allocation2 + $0x428] sm:$0xff]
    %v248 = vld [vmem:[#allocation2 + $0x430] sm:$0xff]
    %v249 = vld [vmem:[#allocation2 + $0x438] sm:$0xff]
    %v250 = vld [vmem:[#allocation2 + $0x440] sm:$0xff]
    %v251 = vld [vmem:[#allocation2 + $0x448] sm:$0xff]
    %v252 = vld [vmem:[#allocation2 + $0x450] sm:$0xff]
    %v253 = vld [vmem:[#allocation2 + $0x458] sm:$0xff]
    %v254 = vld [vmem:[#allocation2 + $0x460] sm:$0xff]
    %v255 = vld [vmem:[#allocation2 + $0x468] sm:$0xff]
    %v256 = vld [vmem:[#allocation2 + $0x470] sm:$0xff]
    %v257 = vld [vmem:[#allocation2 + $0x478] sm:$0xff]
    %v258 = vld [vmem:[#allocation2 + $0x480] sm:$0xff]
    %v259 = vld [vmem:[#allocation2 + $0x488] sm:$0xff]
    %v260 = vld [vmem:[#allocation2 + $0x490] sm:$0xff]
    %v261 = vld [vmem:[#allocation2 + $0x498] sm:$0xff]
    %v262 = vld [vmem:[#allocation2 + $0x4a0] sm:$0xff]
    %v263 = vld [vmem:[#allocation2 + $0x4a8] sm:$0xff]
    %v264 = vld [vmem:[#allocation2 + $0x4b0] sm:$0xff]
    %v265 = vld [vmem:[#allocation2 + $0x4b8] sm:$0xff]
    %v266 = vld [vmem:[#allocation2 + $0x4c0] sm:$0xff]
    %v267 = vld [vmem:[#allocation2 + $0x4c8] sm:$0xff]
    %v268 = vld [vmem:[#allocation2 + $0x4d0] sm:$0xff]
    %v269 = vld [vmem:[#allocation2 + $0x4d8] sm:$0xff]
    %v270 = vld [vmem:[#allocation2 + $0x4e0] sm:$0xff]
    %v271 = vld [vmem:[#allocation2 + $0x4e8] sm:$0xff]
    %v272 = vld [vmem:[#allocation2 + $0x4f0] sm:$0xff]
    %v273 = vld [vmem:[#allocation2 + $0x4f8] sm:$0xff]
    %v274 = vld [vmem:[#allocation2 + $0x500] sm:$0xff]
    %v275 = vld [vmem:[#allocation2 + $0x508] sm:$0xff]
    %v276 = vld [vmem:[#allocation2 + $0x510] sm:$0xff]
    %v277 = vld [vmem:[#allocation2 + $0x518] sm:$0xff]
    %v278 = vld [vmem:[#allocation2 + $0x520] sm:$0xff]
    %v279 = vld [vmem:[#allocation2 + $0x528] sm:$0xff]
    %v280 = vld [vmem:[#allocation2 + $0x530] sm:$0xff]
    %v281 = vld [vmem:[#allocation2 + $0x538] sm:$0xff]
    %v282 = vld [vmem:[#allocation2 + $0x540] sm:$0xff]
    %v283 = vld [vmem:[#allocation2 + $0x548] sm:$0xff]
    %v284 = vld [vmem:[#allocation2 + $0x550] sm:$0xff]
    %v285 = vld [vmem:[#allocation2 + $0x558] sm:$0xff]
    %v286 = vld [vmem:[#allocation2 + $0x560] sm:$0xff]
    %v287 = vld [vmem:[#allocation2 + $0x568] sm:$0xff]
    %v288 = vld [vmem:[#allocation2 + $0x570] sm:$0xff]
    %v289 = vld [vmem:[#allocation2 + $0x578] sm:$0xff]
    %v291 = vperm.slane %v108, 0
    %v292 = vperm.slane %v108, 1
    %295 = vmatpush.msra.mxu0 %v73
    %296 = vmatpush.msra.mxu0 %v71
    %297 = vmatpush.msra.mxu0 %v69
    %298 = vmatpush.msra.mxu0 %v67
    %299 = vmatpush.msra.mxu0 %v65
    %300 = vmatpush.msra.mxu0 %v63
    %301 = vmatpush.msra.mxu0 %v61
    %302 = vmatpush.msra.mxu0 %v59
    %303 = vmatpush.msra.mxu0 %v57
    %304 = vmatpush.msra.mxu0 %v55
    %305 = vmatpush.msra.mxu0 %v53
    %306 = vmatpush.msra.mxu0 %v51
    %307 = vmatpush.msra.mxu0 %v49
    %308 = vmatpush.msra.mxu0 %v47
    %309 = vmatpush.msra.mxu0 %v45
    %310 = vmatpush.msra.mxu0 %v43
    %311 = vmatmul.f32.gmra.mxu0 %v31
    %v312 = vpop.f32.mrf.mxu0
    %v313 = vadd.f32 %v291, %v312
    %314 = vmatmul.f32.gmra.mxu0 %v33
    %v315 = vpop.f32.mrf.mxu0
    %v316 = vadd.f32 %v291, %v315
    %317 = vmatmul.f32.gmra.mxu0 %v35
    %v318 = vpop.f32.mrf.mxu0
    %v319 = vadd.f32 %v291, %v318
    %320 = vmatmul.f32.gmra.mxu0 %v37
    %v321 = vpop.f32.mrf.mxu0
    %v322 = vadd.f32 %v291, %v321
    %323 = vmatmul.f32.gmra.mxu0 %v39
    %v324 = vpop.f32.mrf.mxu0
    %v325 = vadd.f32 %v291, %v324
    %326 = vmatmul.f32.gmra.mxu0 %v41
    %v327 = vpop.f32.mrf.mxu0
    %v328 = vadd.f32 %v291, %v327
    %329 = vdwg.mxu0
    %330 = vmatpush.msra.mxu0 %v105
    %331 = vmatpush.msra.mxu0 %v103
    %332 = vmatpush.msra.mxu0 %v101
    %333 = vmatpush.msra.mxu0 %v99
    %334 = vmatpush.msra.mxu0 %v97
    %335 = vmatpush.msra.mxu0 %v95
    %336 = vmatpush.msra.mxu0 %v93
    %337 = vmatpush.msra.mxu0 %v91
    %338 = vmatpush.msra.mxu0 %v89
    %339 = vmatpush.msra.mxu0 %v87
    %340 = vmatpush.msra.mxu0 %v85
    %341 = vmatpush.msra.mxu0 %v83
    %342 = vmatpush.msra.mxu0 %v81
    %343 = vmatpush.msra.mxu0 %v79
    %344 = vmatpush.msra.mxu0 %v77
    %345 = vmatpush.msra.mxu0 %v75
    %346 = vmatmul.f32.gmra.mxu0 %v32
    %v347 = vpop.f32.mrf.mxu0
    %v348 = vadd.f32 %v313, %v347
    %349 = vmatmul.f32.gmra.mxu0 %v34
    %v350 = vpop.f32.mrf.mxu0
    %v351 = vadd.f32 %v316, %v350
    %352 = vmatmul.f32.gmra.mxu0 %v36
    %v353 = vpop.f32.mrf.mxu0
    %v354 = vadd.f32 %v319, %v353
    %355 = vmatmul.f32.gmra.mxu0 %v38
    %v356 = vpop.f32.mrf.mxu0
    %v357 = vadd.f32 %v322, %v356
    %358 = vmatmul.f32.gmra.mxu0 %v40
    %v359 = vpop.f32.mrf.mxu0
    %v360 = vadd.f32 %v325, %v359
    %361 = vmatmul.f32.gmra.mxu0 %v42
    %v362 = vpop.f32.mrf.mxu0
    %v363 = vadd.f32 %v328, %v362
    %364 = vdwg.mxu0
    %365 = vmatpush.msra.mxu0 %v74
    %366 = vmatpush.msra.mxu0 %v72
    %367 = vmatpush.msra.mxu0 %v70
    %368 = vmatpush.msra.mxu0 %v68
    %369 = vmatpush.msra.mxu0 %v66
    %370 = vmatpush.msra.mxu0 %v64
    %371 = vmatpush.msra.mxu0 %v62
    %372 = vmatpush.msra.mxu0 %v60
    %373 = vmatpush.msra.mxu0 %v58
    %374 = vmatpush.msra.mxu0 %v56
    %375 = vmatpush.msra.mxu0 %v54
    %376 = vmatpush.msra.mxu0 %v52
    %377 = vmatpush.msra.mxu0 %v50
    %378 = vmatpush.msra.mxu0 %v48
    %379 = vmatpush.msra.mxu0 %v46
    %380 = vmatpush.msra.mxu0 %v44
    %381 = vmatmul.f32.gmra.mxu0 %v31
    %v382 = vpop.f32.mrf.mxu0
    %v383 = vadd.f32 %v292, %v382
    %384 = vmatmul.f32.gmra.mxu0 %v33
    %v385 = vpop.f32.mrf.mxu0
    %v386 = vadd.f32 %v292, %v385
    %387 = vmatmul.f32.gmra.mxu0 %v35
    %v388 = vpop.f32.mrf.mxu0
    %v389 = vadd.f32 %v292, %v388
    %390 = vmatmul.f32.gmra.mxu0 %v37
    %v391 = vpop.f32.mrf.mxu0
    %v392 = vadd.f32 %v292, %v391
    %393 = vmatmul.f32.gmra.mxu0 %v39
    %v394 = vpop.f32.mrf.mxu0
    %v395 = vadd.f32 %v292, %v394
    %396 = vmatmul.f32.gmra.mxu0 %v41
    %v397 = vpop.f32.mrf.mxu0
    %v398 = vadd.f32 %v292, %v397
    %399 = vdwg.mxu0
    %400 = vmatpush.msra.mxu0 %v106
    %401 = vmatpush.msra.mxu0 %v104
    %402 = vmatpush.msra.mxu0 %v102
    %403 = vmatpush.msra.mxu0 %v100
    %404 = vmatpush.msra.mxu0 %v98
    %405 = vmatpush.msra.mxu0 %v96
    %406 = vmatpush.msra.mxu0 %v94
    %407 = vmatpush.msra.mxu0 %v92
    %408 = vmatpush.msra.mxu0 %v90
    %409 = vmatpush.msra.mxu0 %v88
    %410 = vmatpush.msra.mxu0 %v86
    %411 = vmatpush.msra.mxu0 %v84
    %412 = vmatpush.msra.mxu0 %v82
    %413 = vmatpush.msra.mxu0 %v80
    %414 = vmatpush.msra.mxu0 %v78
    %415 = vmatpush.msra.mxu0 %v76
    %416 = vmatmul.f32.gmra.mxu0 %v32
    %v417 = vpop.f32.mrf.mxu0
    %v418 = vadd.f32 %v383, %v417
    %419 = vmatmul.f32.gmra.mxu0 %v34
    %v420 = vpop.f32.mrf.mxu0
    %v421 = vadd.f32 %v386, %v420
    %422 = vmatmul.f32.gmra.mxu0 %v36
    %v423 = vpop.f32.mrf.mxu0
    %v424 = vadd.f32 %v389, %v423
    %425 = vmatmul.f32.gmra.mxu0 %v38
    %v426 = vpop.f32.mrf.mxu0
    %v427 = vadd.f32 %v392, %v426
    %428 = vmatmul.f32.gmra.mxu0 %v40
    %v429 = vpop.f32.mrf.mxu0
    %v430 = vadd.f32 %v395, %v429
    %431 = vmatmul.f32.gmra.mxu0 %v42
    %v432 = vpop.f32.mrf.mxu0
    %v433 = vadd.f32 %v398, %v432
    %434 = vdwg.mxu0
    %vm435 = vcmp.gt.f32.partialorder %v348, 0.0
    %vm436 = vcmp.gt.f32.partialorder %v418, 0.0
    %vm437 = vcmp.gt.f32.partialorder %v351, 0.0
    %vm438 = vcmp.gt.f32.partialorder %v421, 0.0
    %vm439 = vcmp.gt.f32.partialorder %v354, 0.0
    %vm440 = vcmp.gt.f32.partialorder %v424, 0.0
    %vm441 = vcmp.gt.f32.partialorder %v357, 0.0
    %vm442 = vcmp.gt.f32.partialorder %v427, 0.0
    %vm443 = vcmp.gt.f32.partialorder %v360, 0.0
    %vm444 = vcmp.gt.f32.partialorder %v430, 0.0
    %vm445 = vcmp.gt.f32.partialorder %v363, 0.0
    %vm446 = vcmp.gt.f32.partialorder %v433, 0.0
    %v447 = vmul.f32 %v348, 0.01
    %v448 = vmul.f32 %v418, 0.01
    %v449 = vmul.f32 %v351, 0.01
    %v450 = vmul.f32 %v421, 0.01
    %v451 = vmul.f32 %v354, 0.01
    %v452 = vmul.f32 %v424, 0.01
    %v453 = vmul.f32 %v357, 0.01
    %v454 = vmul.f32 %v427, 0.01
    %v455 = vmul.f32 %v360, 0.01
    %v456 = vmul.f32 %v430, 0.01
    %v457 = vmul.f32 %v363, 0.01
    %v458 = vmul.f32 %v433, 0.01
    %v459 = vsel %vm435, %v348, %v447
    %v460 = vsel %vm436, %v418, %v448
    %v461 = vsel %vm437, %v351, %v449
    %v462 = vsel %vm438, %v421, %v450
    %v463 = vsel %vm439, %v354, %v451
    %v464 = vsel %vm440, %v424, %v452
    %v465 = vsel %vm441, %v357, %v453
    %v466 = vsel %vm442, %v427, %v454
    %v467 = vsel %vm443, %v360, %v455
    %v468 = vsel %vm444, %v430, %v456
    %v469 = vsel %vm445, %v363, %v457
    %v470 = vsel %vm446, %v433, %v458
    %471 = vmatpush.msra.mxu0 %v129
    %472 = vmatpush.msra.mxu0 %v128
    %473 = vmatpush.msra.mxu0 %v127
    %474 = vmatpush.msra.mxu0 %v126
    %475 = vmatpush.msra.mxu0 %v125
    %476 = vmatpush.msra.mxu0 %v124
    %477 = vmatpush.msra.mxu0 %v123
    %478 = vmatpush.msra.mxu0 %v122
    %479 = vmatpush.msra.mxu0 %v121
    %480 = vmatpush.msra.mxu0 %v120
    %481 = vmatpush.msra.mxu0 %v119
    %482 = vmatpush.msra.mxu0 %v118
    %483 = vmatpush.msra.mxu0 %v117
    %484 = vmatpush.msra.mxu0 %v116
    %485 = vmatpush.msra.mxu0 %v115
    %486 = vmatpush.msra.mxu0 %v114
    %487 = vmatmul.f32.gmra.mxu0 %v459
    %v488 = vpop.f32.mrf.mxu0
    %v489 = vadd.f32 %v109, %v488
    %490 = vmatmul.f32.gmra.mxu0 %v461
    %v491 = vpop.f32.mrf.mxu0
    %v492 = vadd.f32 %v109, %v491
    %493 = vmatmul.f32.gmra.mxu0 %v463
    %v494 = vpop.f32.mrf.mxu0
    %v495 = vadd.f32 %v109, %v494
    %496 = vmatmul.f32.gmra.mxu0 %v465
    %v497 = vpop.f32.mrf.mxu0
    %v498 = vadd.f32 %v109, %v497
    %499 = vmatmul.f32.gmra.mxu0 %v467
    %v500 = vpop.f32.mrf.mxu0
    %v501 = vadd.f32 %v109, %v500
    %502 = vmatmul.f32.gmra.mxu0 %v469
    %v503 = vpop.f32.mrf.mxu0
    %v504 = vadd.f32 %v109, %v503
    %505 = vdwg.mxu0
    %506 = vmatpush.msra.mxu0 %v145
    %507 = vmatpush.msra.mxu0 %v144
    %508 = vmatpush.msra.mxu0 %v143
    %509 = vmatpush.msra.mxu0 %v142
    %510 = vmatpush.msra.mxu0 %v141
    %511 = vmatpush.msra.mxu0 %v140
    %512 = vmatpush.msra.mxu0 %v139
    %513 = vmatpush.msra.mxu0 %v138
    %514 = vmatpush.msra.mxu0 %v137
    %515 = vmatpush.msra.mxu0 %v136
    %516 = vmatpush.msra.mxu0 %v135
    %517 = vmatpush.msra.mxu0 %v134
    %518 = vmatpush.msra.mxu0 %v133
    %519 = vmatpush.msra.mxu0 %v132
    %520 = vmatpush.msra.mxu0 %v131
    %521 = vmatpush.msra.mxu0 %v130
    %522 = vmatmul.f32.gmra.mxu0 %v460
    %v523 = vpop.f32.mrf.mxu0
    %v524 = vadd.f32 %v489, %v523
    %525 = vmatmul.f32.gmra.mxu0 %v462
    %v526 = vpop.f32.mrf.mxu0
    %v527 = vadd.f32 %v492, %v526
    %528 = vmatmul.f32.gmra.mxu0 %v464
    %v529 = vpop.f32.mrf.mxu0
    %v530 = vadd.f32 %v495, %v529
    %531 = vmatmul.f32.gmra.mxu0 %v466
    %v532 = vpop.f32.mrf.mxu0
    %v533 = vadd.f32 %v498, %v532
    %534 = vmatmul.f32.gmra.mxu0 %v468
    %v535 = vpop.f32.mrf.mxu0
    %v536 = vadd.f32 %v501, %v535
    %537 = vmatmul.f32.gmra.mxu0 %v470
    %v538 = vpop.f32.mrf.mxu0
    %v539 = vadd.f32 %v504, %v538
    %540 = vdwg.mxu0
    %vm541 = vcmp.gt.f32.partialorder %v524, 0.0
    %vm542 = vcmp.gt.f32.partialorder %v527, 0.0
    %vm543 = vcmp.gt.f32.partialorder %v530, 0.0
    %vm544 = vcmp.gt.f32.partialorder %v533, 0.0
    %vm545 = vcmp.gt.f32.partialorder %v536, 0.0
    %vm546 = vcmp.gt.f32.partialorder %v539, 0.0
    %v547 = vmul.f32 %v524, 0.01
    %v548 = vmul.f32 %v527, 0.01
    %v549 = vmul.f32 %v530, 0.01
    %v550 = vmul.f32 %v533, 0.01
    %v551 = vmul.f32 %v536, 0.01
    %v552 = vmul.f32 %v539, 0.01
    %v553 = vsel %vm541, %v524, %v547
    %v554 = vsel %vm542, %v527, %v548
    %v555 = vsel %vm543, %v530, %v549
    %v556 = vsel %vm544, %v533, %v550
    %v557 = vsel %vm545, %v536, %v551
    %v558 = vsel %vm546, %v539, %v552
    %559 = vmatpush.msra.mxu0 %v161
    %560 = vmatpush.msra.mxu0 %v160
    %561 = vmatpush.msra.mxu0 %v159
    %562 = vmatpush.msra.mxu0 %v158
    %563 = vmatpush.msra.mxu0 %v157
    %564 = vmatpush.msra.mxu0 %v156
    %565 = vmatpush.msra.mxu0 %v155
    %566 = vmatpush.msra.mxu0 %v154
    %567 = vmatpush.msra.mxu0 %v153
    %568 = vmatpush.msra.mxu0 %v152
    %569 = vmatpush.msra.mxu0 %v151
    %570 = vmatpush.msra.mxu0 %v150
    %571 = vmatpush.msra.mxu0 %v149
    %572 = vmatpush.msra.mxu0 %v148
    %573 = vmatpush.msra.mxu0 %v147
    %574 = vmatpush.msra.mxu0 %v146
    %575 = vmatmul.f32.gmra.mxu0 %v553
    %v576 = vpop.f32.mrf.mxu0
    %v577 = vadd.f32 %v110, %v576
    %578 = vmatmul.f32.gmra.mxu0 %v554
    %v579 = vpop.f32.mrf.mxu0
    %v580 = vadd.f32 %v110, %v579
    %581 = vmatmul.f32.gmra.mxu0 %v555
    %v582 = vpop.f32.mrf.mxu0
    %v583 = vadd.f32 %v110, %v582
    %584 = vmatmul.f32.gmra.mxu0 %v556
    %v585 = vpop.f32.mrf.mxu0
    %v586 = vadd.f32 %v110, %v585
    %587 = vmatmul.f32.gmra.mxu0 %v557
    %v588 = vpop.f32.mrf.mxu0
    %v589 = vadd.f32 %v110, %v588
    %590 = vmatmul.f32.gmra.mxu0 %v558
    %v591 = vpop.f32.mrf.mxu0
    %v592 = vadd.f32 %v110, %v591
    %593 = vdwg.mxu0
    %v594 = vmax.f32 %v577, 0.0
    %v595 = vmax.f32 %v580, 0.0
    %v596 = vmax.f32 %v583, 0.0
    %v597 = vmax.f32 %v586, 0.0
    %v598 = vmax.f32 %v589, 0.0
    %v599 = vmax.f32 %v592, 0.0
    %600 = vmatpush.msra.mxu0 %v177
    %601 = vmatpush.msra.mxu0 %v176
    %602 = vmatpush.msra.mxu0 %v175
    %603 = vmatpush.msra.mxu0 %v174
    %604 = vmatpush.msra.mxu0 %v173
    %605 = vmatpush.msra.mxu0 %v172
    %606 = vmatpush.msra.mxu0 %v171
    %607 = vmatpush.msra.mxu0 %v170
    %608 = vmatpush.msra.mxu0 %v169
    %609 = vmatpush.msra.mxu0 %v168
    %610 = vmatpush.msra.mxu0 %v167
    %611 = vmatpush.msra.mxu0 %v166
    %612 = vmatpush.msra.mxu0 %v165
    %613 = vmatpush.msra.mxu0 %v164
    %614 = vmatpush.msra.mxu0 %v163
    %615 = vmatpush.msra.mxu0 %v162
    %616 = vmatmul.f32.gmra.mxu0 %v594
    %v617 = vpop.f32.mrf.mxu0
    %v618 = vadd.f32 %v111, %v617
    %619 = vmatmul.f32.gmra.mxu0 %v595
    %v620 = vpop.f32.mrf.mxu0
    %v621 = vadd.f32 %v111, %v620
    %622 = vmatmul.f32.gmra.mxu0 %v596
    %v623 = vpop.f32.mrf.mxu0
    %v624 = vadd.f32 %v111, %v623
    %625 = vmatmul.f32.gmra.mxu0 %v597
    %v626 = vpop.f32.mrf.mxu0
    %v627 = vadd.f32 %v111, %v626
    %628 = vmatmul.f32.gmra.mxu0 %v598
    %v629 = vpop.f32.mrf.mxu0
    %v630 = vadd.f32 %v111, %v629
    %631 = vmatmul.f32.gmra.mxu0 %v599
    %v632 = vpop.f32.mrf.mxu0
    %v633 = vadd.f32 %v111, %v632
    %634 = vdwg.mxu0
    %v635 = vmax.f32 %v618, 0.0
    %v636 = vmax.f32 %v621, 0.0
    %v637 = vmax.f32 %v624, 0.0
    %v638 = vmax.f32 %v627, 0.0
    %v639 = vmax.f32 %v630, 0.0
    %v640 = vmax.f32 %v633, 0.0
    %v641 = vlaneseq
    %v642 = vshrl.u32 %v641, 7
    %v643 = vadd.s32 %v642, 8
    %v644 = vadd.s32 %v642, 16
    %v645 = vadd.s32 %v642, 24
    %v646 = vadd.s32 %v642, 32
    %v647 = vadd.s32 %v642, 40
    %v648 = vlaneseq
    %v649 = vand.u32 %v648, 127
    %v650 = vadd.s32 %v649, 128
    %v651 = vadd.s32 %v649, 256
    %v652 = vadd.s32 %v649, 384
    %v653 = vadd.s32 %v649, 512
    %v654 = vadd.s32 %v649, 640
    %vm655 = vcmp.ge.s32.totalorder %v642, 24
    %vm656 = vcmp.ge.s32.totalorder %v643, 24
    %vm657 = vcmp.ge.s32.totalorder %v644, 24
    %vm658 = vcmp.ge.s32.totalorder %v645, 24
    %vm659 = vcmp.ge.s32.totalorder %v646, 24
    %vm660 = vcmp.ge.s32.totalorder %v647, 24
    %v661 = vsub.s32 %v642, 24
    %v662 = vsub.s32 %v643, 24
    %v663 = vsub.s32 %v644, 24
    %v664 = vsub.s32 %v646, 24
    %v665 = vsub.s32 %v647, 24
    %v666 = vsel %vm655, %v661, %v642
    %v667 = vsel %vm656, %v662, %v643
    %v668 = vsel %vm657, %v663, %v644
    %v669 = vsel %vm658, %v642, %v645
    %v670 = vsel %vm659, %v664, %v646
    %v671 = vsel %vm660, %v665, %v647
    %v672 = vmul.u32 %v666, 32
    %v673 = vmul.u32 %v667, 32
    %v674 = vmul.u32 %v668, 32
    %v675 = vmul.u32 %v669, 32
    %v676 = vmul.u32 %v670, 32
    %v677 = vmul.u32 %v671, 32
    %vm678 = vcmp.ge.s32.totalorder %v649, %v672
    %vm679 = vcmp.ge.s32.totalorder %v650, %v672
    %vm680 = vcmp.ge.s32.totalorder %v651, %v672
    %vm681 = vcmp.ge.s32.totalorder %v652, %v672
    %vm682 = vcmp.ge.s32.totalorder %v653, %v672
    %vm683 = vcmp.ge.s32.totalorder %v654, %v672
    %vm684 = vcmp.ge.s32.totalorder %v649, %v673
    %vm685 = vcmp.ge.s32.totalorder %v650, %v673
    %vm686 = vcmp.ge.s32.totalorder %v651, %v673
    %vm687 = vcmp.ge.s32.totalorder %v652, %v673
    %vm688 = vcmp.ge.s32.totalorder %v653, %v673
    %vm689 = vcmp.ge.s32.totalorder %v654, %v673
    %vm690 = vcmp.ge.s32.totalorder %v649, %v674
    %vm691 = vcmp.ge.s32.totalorder %v650, %v674
    %vm692 = vcmp.ge.s32.totalorder %v651, %v674
    %vm693 = vcmp.ge.s32.totalorder %v652, %v674
    %vm694 = vcmp.ge.s32.totalorder %v653, %v674
    %vm695 = vcmp.ge.s32.totalorder %v654, %v674
    %vm696 = vcmp.ge.s32.totalorder %v649, %v675
    %vm697 = vcmp.ge.s32.totalorder %v650, %v675
    %vm698 = vcmp.ge.s32.totalorder %v651, %v675
    %vm699 = vcmp.ge.s32.totalorder %v652, %v675
    %vm700 = vcmp.ge.s32.totalorder %v653, %v675
    %vm701 = vcmp.ge.s32.totalorder %v654, %v675
    %vm702 = vcmp.ge.s32.totalorder %v649, %v676
    %vm703 = vcmp.ge.s32.totalorder %v650, %v676
    %vm704 = vcmp.ge.s32.totalorder %v651, %v676
    %vm705 = vcmp.ge.s32.totalorder %v652, %v676
    %vm706 = vcmp.ge.s32.totalorder %v653, %v676
    %vm707 = vcmp.ge.s32.totalorder %v654, %v676
    %vm708 = vcmp.ge.s32.totalorder %v649, %v677
    %vm709 = vcmp.ge.s32.totalorder %v650, %v677
    %vm710 = vcmp.ge.s32.totalorder %v651, %v677
    %vm711 = vcmp.ge.s32.totalorder %v652, %v677
    %vm712 = vcmp.ge.s32.totalorder %v653, %v677
    %vm713 = vcmp.ge.s32.totalorder %v654, %v677
    %v714 = vadd.s32 %v672, 32
    %v715 = vadd.s32 %v673, 32
    %v716 = vadd.s32 %v674, 32
    %v717 = vadd.s32 %v675, 32
    %v718 = vadd.s32 %v676, 32
    %v719 = vadd.s32 %v677, 32
    %vm720 = vcmp.lt.s32.totalorder %v649, %v714
    %vm721 = vcmp.lt.s32.totalorder %v650, %v714
    %vm722 = vcmp.lt.s32.totalorder %v651, %v714
    %vm723 = vcmp.lt.s32.totalorder %v652, %v714
    %vm724 = vcmp.lt.s32.totalorder %v653, %v714
    %vm725 = vcmp.lt.s32.totalorder %v654, %v714
    %vm726 = vcmp.lt.s32.totalorder %v649, %v715
    %vm727 = vcmp.lt.s32.totalorder %v650, %v715
    %vm728 = vcmp.lt.s32.totalorder %v651, %v715
    %vm729 = vcmp.lt.s32.totalorder %v652, %v715
    %vm730 = vcmp.lt.s32.totalorder %v653, %v715
    %vm731 = vcmp.lt.s32.totalorder %v654, %v715
    %vm732 = vcmp.lt.s32.totalorder %v649, %v716
    %vm733 = vcmp.lt.s32.totalorder %v650, %v716
    %vm734 = vcmp.lt.s32.totalorder %v651, %v716
    %vm735 = vcmp.lt.s32.totalorder %v652, %v716
    %vm736 = vcmp.lt.s32.totalorder %v653, %v716
    %vm737 = vcmp.lt.s32.totalorder %v654, %v716
    %vm738 = vcmp.lt.s32.totalorder %v649, %v717
    %vm739 = vcmp.lt.s32.totalorder %v650, %v717
    %vm740 = vcmp.lt.s32.totalorder %v651, %v717
    %vm741 = vcmp.lt.s32.totalorder %v652, %v717
    %vm742 = vcmp.lt.s32.totalorder %v653, %v717
    %vm743 = vcmp.lt.s32.totalorder %v654, %v717
    %vm744 = vcmp.lt.s32.totalorder %v649, %v718
    %vm745 = vcmp.lt.s32.totalorder %v650, %v718
    %vm746 = vcmp.lt.s32.totalorder %v651, %v718
    %vm747 = vcmp.lt.s32.totalorder %v652, %v718
    %vm748 = vcmp.lt.s32.totalorder %v653, %v718
    %vm749 = vcmp.lt.s32.totalorder %v654, %v718
    %vm750 = vcmp.lt.s32.totalorder %v649, %v719
    %vm751 = vcmp.lt.s32.totalorder %v650, %v719
    %vm752 = vcmp.lt.s32.totalorder %v651, %v719
    %vm753 = vcmp.lt.s32.totalorder %v652, %v719
    %vm754 = vcmp.lt.s32.totalorder %v653, %v719
    %vm755 = vcmp.lt.s32.totalorder %v654, %v719
    %vm756 = vmand %vm678, %vm720
    %vm757 = vmand %vm679, %vm721
    %vm758 = vmand %vm680, %vm722
    %vm759 = vmand %vm681, %vm723
    %vm760 = vmand %vm682, %vm724
    %vm761 = vmand %vm683, %vm725
    %vm762 = vmand %vm684, %vm726
    %vm763 = vmand %vm685, %vm727
    %vm764 = vmand %vm686, %vm728
    %vm765 = vmand %vm687, %vm729
    %vm766 = vmand %vm688, %vm730
    %vm767 = vmand %vm689, %vm731
    %vm768 = vmand %vm690, %vm732
    %vm769 = vmand %vm691, %vm733
    %vm770 = vmand %vm692, %vm734
    %vm771 = vmand %vm693, %vm735
    %vm772 = vmand %vm694, %vm736
    %vm773 = vmand %vm695, %vm737
    %vm774 = vmand %vm696, %vm738
    %vm775 = vmand %vm697, %vm739
    %vm776 = vmand %vm698, %vm740
    %vm777 = vmand %vm699, %vm741
    %vm778 = vmand %vm700, %vm742
    %vm779 = vmand %vm701, %vm743
    %vm780 = vmand %vm702, %vm744
    %vm781 = vmand %vm703, %vm745
    %vm782 = vmand %vm704, %vm746
    %vm783 = vmand %vm705, %vm747
    %vm784 = vmand %vm706, %vm748
    %vm785 = vmand %vm707, %vm749
    %vm786 = vmand %vm708, %vm750
    %vm787 = vmand %vm709, %vm751
    %vm788 = vmand %vm710, %vm752
    %vm789 = vmand %vm711, %vm753
    %vm790 = vmand %vm712, %vm754
    %vm791 = vmand %vm713, %vm755
    %v792 = vsel %vm756, %v635, 0.0
    %v793 = vsel %vm757, %v635, 0.0
    %v794 = vsel %vm758, %v635, 0.0
    %v795 = vsel %vm759, %v635, 0.0
    %v796 = vsel %vm760, %v635, 0.0
    %v797 = vsel %vm761, %v635, 0.0
    %v798 = vsel %vm762, %v636, 0.0
    %v799 = vsel %vm763, %v636, 0.0
    %v800 = vsel %vm764, %v636, 0.0
    %v801 = vsel %vm765, %v636, 0.0
    %v802 = vsel %vm766, %v636, 0.0
    %v803 = vsel %vm767, %v636, 0.0
    %v804 = vsel %vm768, %v637, 0.0
    %v805 = vsel %vm769, %v637, 0.0
    %v806 = vsel %vm770, %v637, 0.0
    %v807 = vsel %vm771, %v637, 0.0
    %v808 = vsel %vm772, %v637, 0.0
    %v809 = vsel %vm773, %v637, 0.0
    %v810 = vsel %vm774, %v638, 0.0
    %v811 = vsel %vm775, %v638, 0.0
    %v812 = vsel %vm776, %v638, 0.0
    %v813 = vsel %vm777, %v638, 0.0
    %v814 = vsel %vm778, %v638, 0.0
    %v815 = vsel %vm779, %v638, 0.0
    %v816 = vsel %vm780, %v639, 0.0
    %v817 = vsel %vm781, %v639, 0.0
    %v818 = vsel %vm782, %v639, 0.0
    %v819 = vsel %vm783, %v639, 0.0
    %v820 = vsel %vm784, %v639, 0.0
    %v821 = vsel %vm785, %v639, 0.0
    %v822 = vsel %vm786, %v640, 0.0
    %v823 = vsel %vm787, %v640, 0.0
    %v824 = vsel %vm788, %v640, 0.0
    %v825 = vsel %vm789, %v640, 0.0
    %v826 = vsel %vm790, %v640, 0.0
    %v827 = vsel %vm791, %v640, 0.0
    %v828 = vmul.u32 %v642, 24
    %vm829 = vcmp.ge.s32.totalorder %v649, %v828
    %v830 = vadd.s32 %v642, 1
    %v831 = vmul.u32 %v830, 24
    %vm832 = vcmp.lt.s32.totalorder %v649, %v831
    %vm833 = vmand %vm829, %vm832
    %v834 = vsel %vm833, 1.0, 0.0
    %vm835 = vcmask 392192
    %v837 = vsel %vm835, %v834, 0
    %839 = vmatpush.msra.mxu0 0.0
    %840 = vmatpush.msra.mxu0 0.0
    %841 = vmatpush.msra.mxu0 0.0
    %842 = vmatpush.msra.mxu0 0.0
    %843 = vmatpush.msra.mxu0 0.0
    %844 = vmatpush.msra.mxu0 0.0
    %845 = vmatpush.msra.mxu0 0.0
    %846 = vmatpush.msra.mxu0 0.0
    %847 = vmatpush.msra.mxu0 0.0
    %848 = vmatpush.msra.mxu0 0.0
    %849 = vmatpush.msra.mxu0 %v822
    %850 = vmatpush.msra.mxu0 %v816
    %851 = vmatpush.msra.mxu0 %v810
    %852 = vmatpush.msra.mxu0 %v804
    %853 = vmatpush.msra.mxu0 %v798
    %854 = vmatpush.msra.mxu0 %v792
    %855 = vmatmul.f32.gmra.mxu0 %v837
    %v856 = vpop.f32.mrf.mxu0
    %v857 = vadd.f32 0.0, %v856
    %858 = vdwg.mxu0
    %859 = vmatpush.msra.mxu0 0.0
    %860 = vmatpush.msra.mxu0 0.0
    %861 = vmatpush.msra.mxu0 0.0
    %862 = vmatpush.msra.mxu0 0.0
    %863 = vmatpush.msra.mxu0 0.0
    %864 = vmatpush.msra.mxu0 0.0
    %865 = vmatpush.msra.mxu0 0.0
    %866 = vmatpush.msra.mxu0 0.0
    %867 = vmatpush.msra.mxu0 0.0
    %868 = vmatpush.msra.mxu0 0.0
    %869 = vmatpush.msra.mxu0 %v823
    %870 = vmatpush.msra.mxu0 %v817
    %871 = vmatpush.msra.mxu0 %v811
    %872 = vmatpush.msra.mxu0 %v805
    %873 = vmatpush.msra.mxu0 %v799
    %874 = vmatpush.msra.mxu0 %v793
    %875 = vmatmul.f32.gmra.mxu0 %v837
    %v876 = vpop.f32.mrf.mxu0
    %v877 = vadd.f32 0.0, %v876
    %878 = vdwg.mxu0
    %879 = vmatpush.msra.mxu0 0.0
    %880 = vmatpush.msra.mxu0 0.0
    %881 = vmatpush.msra.mxu0 0.0
    %882 = vmatpush.msra.mxu0 0.0
    %883 = vmatpush.msra.mxu0 0.0
    %884 = vmatpush.msra.mxu0 0.0
    %885 = vmatpush.msra.mxu0 0.0
    %886 = vmatpush.msra.mxu0 0.0
    %887 = vmatpush.msra.mxu0 0.0
    %888 = vmatpush.msra.mxu0 0.0
    %889 = vmatpush.msra.mxu0 %v824
    %890 = vmatpush.msra.mxu0 %v818
    %891 = vmatpush.msra.mxu0 %v812
    %892 = vmatpush.msra.mxu0 %v806
    %893 = vmatpush.msra.mxu0 %v800
    %894 = vmatpush.msra.mxu0 %v794
    %895 = vmatmul.f32.gmra.mxu0 %v837
    %v896 = vpop.f32.mrf.mxu0
    %v897 = vadd.f32 0.0, %v896
    %898 = vdwg.mxu0
    %899 = vmatpush.msra.mxu0 0.0
    %900 = vmatpush.msra.mxu0 0.0
    %901 = vmatpush.msra.mxu0 0.0
    %902 = vmatpush.msra.mxu0 0.0
    %903 = vmatpush.msra.mxu0 0.0
    %904 = vmatpush.msra.mxu0 0.0
    %905 = vmatpush.msra.mxu0 0.0
    %906 = vmatpush.msra.mxu0 0.0
    %907 = vmatpush.msra.mxu0 0.0
    %908 = vmatpush.msra.mxu0 0.0
    %909 = vmatpush.msra.mxu0 %v825
    %910 = vmatpush.msra.mxu0 %v819
    %911 = vmatpush.msra.mxu0 %v813
    %912 = vmatpush.msra.mxu0 %v807
    %913 = vmatpush.msra.mxu0 %v801
    %914 = vmatpush.msra.mxu0 %v795
    %915 = vmatmul.f32.gmra.mxu0 %v837
    %v916 = vpop.f32.mrf.mxu0
    %v917 = vadd.f32 0.0, %v916
    %918 = vdwg.mxu0
    %919 = vmatpush.msra.mxu0 0.0
    %920 = vmatpush.msra.mxu0 0.0
    %921 = vmatpush.msra.mxu0 0.0
    %922 = vmatpush.msra.mxu0 0.0
    %923 = vmatpush.msra.mxu0 0.0
    %924 = vmatpush.msra.mxu0 0.0
    %925 = vmatpush.msra.mxu0 0.0
    %926 = vmatpush.msra.mxu0 0.0
    %927 = vmatpush.msra.mxu0 0.0
    %928 = vmatpush.msra.mxu0 0.0
    %929 = vmatpush.msra.mxu0 %v826
    %930 = vmatpush.msra.mxu0 %v820
    %931 = vmatpush.msra.mxu0 %v814
    %932 = vmatpush.msra.mxu0 %v808
    %933 = vmatpush.msra.mxu0 %v802
    %934 = vmatpush.msra.mxu0 %v796
    %935 = vmatmul.f32.gmra.mxu0 %v837
    %v936 = vpop.f32.mrf.mxu0
    %v937 = vadd.f32 0.0, %v936
    %938 = vdwg.mxu0
    %939 = vmatpush.msra.mxu0 0.0
    %940 = vmatpush.msra.mxu0 0.0
    %941 = vmatpush.msra.mxu0 0.0
    %942 = vmatpush.msra.mxu0 0.0
    %943 = vmatpush.msra.mxu0 0.0
    %944 = vmatpush.msra.mxu0 0.0
    %945 = vmatpush.msra.mxu0 0.0
    %946 = vmatpush.msra.mxu0 0.0
    %947 = vmatpush.msra.mxu0 0.0
    %948 = vmatpush.msra.mxu0 0.0
    %949 = vmatpush.msra.mxu0 %v827
    %950 = vmatpush.msra.mxu0 %v821
    %951 = vmatpush.msra.mxu0 %v815
    %952 = vmatpush.msra.mxu0 %v809
    %953 = vmatpush.msra.mxu0 %v803
    %954 = vmatpush.msra.mxu0 %v797
    %955 = vmatmul.f32.gmra.mxu0 %v837
    %v956 = vpop.f32.mrf.mxu0
    %v957 = vadd.f32 0.0, %v956
    %958 = vdwg.mxu0
    %959 = vmatpush.msra.mxu0 %v193
    %960 = vmatpush.msra.mxu0 %v192
    %961 = vmatpush.msra.mxu0 %v191
    %962 = vmatpush.msra.mxu0 %v190
    %963 = vmatpush.msra.mxu0 %v189
    %964 = vmatpush.msra.mxu0 %v188
    %965 = vmatpush.msra.mxu0 %v187
    %966 = vmatpush.msra.mxu0 %v186
    %967 = vmatpush.msra.mxu0 %v185
    %968 = vmatpush.msra.mxu0 %v184
    %969 = vmatpush.msra.mxu0 %v183
    %970 = vmatpush.msra.mxu0 %v182
    %971 = vmatpush.msra.mxu0 %v181
    %972 = vmatpush.msra.mxu0 %v180
    %973 = vmatpush.msra.mxu0 %v179
    %974 = vmatpush.msra.mxu0 %v178
    %975 = vmatmul.f32.gmra.mxu0 %v857
    %v976 = vpop.f32.mrf.mxu0
    %v977 = vadd.f32 %v112, %v976
    %978 = vdwg.mxu0
    %979 = vmatpush.msra.mxu0 %v209
    %980 = vmatpush.msra.mxu0 %v208
    %981 = vmatpush.msra.mxu0 %v207
    %982 = vmatpush.msra.mxu0 %v206
    %983 = vmatpush.msra.mxu0 %v205
    %984 = vmatpush.msra.mxu0 %v204
    %985 = vmatpush.msra.mxu0 %v203
    %986 = vmatpush.msra.mxu0 %v202
    %987 = vmatpush.msra.mxu0 %v201
    %988 = vmatpush.msra.mxu0 %v200
    %989 = vmatpush.msra.mxu0 %v199
    %990 = vmatpush.msra.mxu0 %v198
    %991 = vmatpush.msra.mxu0 %v197
    %992 = vmatpush.msra.mxu0 %v196
    %993 = vmatpush.msra.mxu0 %v195
    %994 = vmatpush.msra.mxu0 %v194
    %995 = vmatmul.f32.gmra.mxu0 %v877
    %v996 = vpop.f32.mrf.mxu0
    %v997 = vadd.f32 %v977, %v996
    %998 = vdwg.mxu0
    %999 = vmatpush.msra.mxu0 %v225
    %1000 = vmatpush.msra.mxu0 %v224
    %1001 = vmatpush.msra.mxu0 %v223
    %1002 = vmatpush.msra.mxu0 %v222
    %1003 = vmatpush.msra.mxu0 %v221
    %1004 = vmatpush.msra.mxu0 %v220
    %1005 = vmatpush.msra.mxu0 %v219
    %1006 = vmatpush.msra.mxu0 %v218
    %1007 = vmatpush.msra.mxu0 %v217
    %1008 = vmatpush.msra.mxu0 %v216
    %1009 = vmatpush.msra.mxu0 %v215
    %1010 = vmatpush.msra.mxu0 %v214
    %1011 = vmatpush.msra.mxu0 %v213
    %1012 = vmatpush.msra.mxu0 %v212
    %1013 = vmatpush.msra.mxu0 %v211
    %1014 = vmatpush.msra.mxu0 %v210
    %1015 = vmatmul.f32.gmra.mxu0 %v897
    %v1016 = vpop.f32.mrf.mxu0
    %v1017 = vadd.f32 %v997, %v1016
    %1018 = vdwg.mxu0
    %1019 = vmatpush.msra.mxu0 %v241
    %1020 = vmatpush.msra.mxu0 %v240
    %1021 = vmatpush.msra.mxu0 %v239
    %1022 = vmatpush.msra.mxu0 %v238
    %1023 = vmatpush.msra.mxu0 %v237
    %1024 = vmatpush.msra.mxu0 %v236
    %1025 = vmatpush.msra.mxu0 %v235
    %1026 = vmatpush.msra.mxu0 %v234
    %1027 = vmatpush.msra.mxu0 %v233
    %1028 = vmatpush.msra.mxu0 %v232
    %1029 = vmatpush.msra.mxu0 %v231
    %1030 = vmatpush.msra.mxu0 %v230
    %1031 = vmatpush.msra.mxu0 %v229
    %1032 = vmatpush.msra.mxu0 %v228
    %1033 = vmatpush.msra.mxu0 %v227
    %1034 = vmatpush.msra.mxu0 %v226
    %1035 = vmatmul.f32.gmra.mxu0 %v917
    %v1036 = vpop.f32.mrf.mxu0
    %v1037 = vadd.f32 %v1017, %v1036
    %1038 = vdwg.mxu0
    %1039 = vmatpush.msra.mxu0 %v257
    %1040 = vmatpush.msra.mxu0 %v256
    %1041 = vmatpush.msra.mxu0 %v255
    %1042 = vmatpush.msra.mxu0 %v254
    %1043 = vmatpush.msra.mxu0 %v253
    %1044 = vmatpush.msra.mxu0 %v252
    %1045 = vmatpush.msra.mxu0 %v251
    %1046 = vmatpush.msra.mxu0 %v250
    %1047 = vmatpush.msra.mxu0 %v249
    %1048 = vmatpush.msra.mxu0 %v248
    %1049 = vmatpush.msra.mxu0 %v247
    %1050 = vmatpush.msra.mxu0 %v246
    %1051 = vmatpush.msra.mxu0 %v245
    %1052 = vmatpush.msra.mxu0 %v244
    %1053 = vmatpush.msra.mxu0 %v243
    %1054 = vmatpush.msra.mxu0 %v242
    %1055 = vmatmul.f32.gmra.mxu0 %v937
    %v1056 = vpop.f32.mrf.mxu0
    %v1057 = vadd.f32 %v1037, %v1056
    %1058 = vdwg.mxu0
    %1059 = vmatpush.msra.mxu0 %v273
    %1060 = vmatpush.msra.mxu0 %v272
    %1061 = vmatpush.msra.mxu0 %v271
    %1062 = vmatpush.msra.mxu0 %v270
    %1063 = vmatpush.msra.mxu0 %v269
    %1064 = vmatpush.msra.mxu0 %v268
    %1065 = vmatpush.msra.mxu0 %v267
    %1066 = vmatpush.msra.mxu0 %v266
    %1067 = vmatpush.msra.mxu0 %v265
    %1068 = vmatpush.msra.mxu0 %v264
    %1069 = vmatpush.msra.mxu0 %v263
    %1070 = vmatpush.msra.mxu0 %v262
    %1071 = vmatpush.msra.mxu0 %v261
    %1072 = vmatpush.msra.mxu0 %v260
    %1073 = vmatpush.msra.mxu0 %v259
    %1074 = vmatpush.msra.mxu0 %v258
    %1075 = vmatmul.f32.gmra.mxu0 %v957
    %v1076 = vpop.f32.mrf.mxu0
    %v1077 = vadd.f32 %v1057, %v1076
    %1078 = vdwg.mxu0
    %v1079 = vmax.f32 %v1077, 0.0
    %1080 = vmatpush.msra.mxu0 %v289
    %1081 = vmatpush.msra.mxu0 %v288
    %1082 = vmatpush.msra.mxu0 %v287
    %1083 = vmatpush.msra.mxu0 %v286
    %1084 = vmatpush.msra.mxu0 %v285
    %1085 = vmatpush.msra.mxu0 %v284
    %1086 = vmatpush.msra.mxu0 %v283
    %1087 = vmatpush.msra.mxu0 %v282
    %1088 = vmatpush.msra.mxu0 %v281
    %1089 = vmatpush.msra.mxu0 %v280
    %1090 = vmatpush.msra.mxu0 %v279
    %1091 = vmatpush.msra.mxu0 %v278
    %1092 = vmatpush.msra.mxu0 %v277
    %1093 = vmatpush.msra.mxu0 %v276
    %1094 = vmatpush.msra.mxu0 %v275
    %1095 = vmatpush.msra.mxu0 %v274
    %1096 = vmatmul.f32.gmra.mxu0 %v1079
    %v1097 = vpop.f32.mrf.mxu0
    %v1098 = vadd.f32 %v113, %v1097
    %1099 = vdwg.mxu0
    %vm1100 = vcmask 1041408
    %v1101 = vsel %vm1100, %v1098, -inf
    %1102 = vmax.xlane.f32.xlu0 %v1101
    %v1103 = vpop.xlane.xlu0 %1102
    %v1104 = vsub.f32 %v1098, %v1103
    %v1105 = vmul.f32 %v1104, 1.442695
    %v1106 = vpow.pop %v1105
    %v1107 = vsel %vm1100, %v1106, 0.0
    %1108 = vadd.xlane.f32.xlu0 %v1107
    %v1109 = vpop.xlane.xlu0 %1108
    %v1110 = vrcp.pop %v1109
    %v1111 = vmul.f32 %v1109, %v1110
    %v1112 = vsub.f32 1.0, %v1111
    %v1113 = vmul.f32 %v1110, %v1112
    %v1114 = vadd.f32 %v1110, %v1113
    %vm1115 = vweird.f32 %v1109
    %vm1116 = vweird.f32 %v1110
    %vm1117 = vmor %vm1115, %vm1116
    %v1118 = vsel %vm1117, %v1110, %v1114
    %v1119 = vand.u32 2147483647, %v1109
    %vm1120 = vcmp.eq.f32.partialorder %v1119, 8.507059e+37
    %v1121 = vand.u32 %v1109, 2147483648
    %v1122 = vor.u32 1.1754944e-38, %v1121
    %v1123 = vsel %vm1120, %v1122, %v1118
    %v1124 = vmul.f32 %v1106, %v1123
    %1125 = vst [vmem:[#allocation5] sm:$0x3] %v1124
    // Predicated region
    $region18: #{slid_mlp_forward.1} parent=1 // pred_check
      _
    $region19: #{slid_mlp_forward.1} parent=1 // pred_check_branch
      %1127 = sbr.rel (0) target = $region21
    $region20: #{slid_mlp_forward.1} parent=1 // pred_region
      %1129 = vsyncadd [#allocation4], 0
      %s1131 = sshll.u32 [#allocation5], 4
      %s1132 = int_to_ptr.vmem [resolvable:$true] %s1131
      %s1133 = sshll.u32 %s3, 4
      %s1134 = int_to_ptr.hbm [resolvable:$true] %s1133
      %1136 = dma.vmem_to_hbm [thread:$0]  %s1132, 32, %s1134, [#allocation4]
    $region21: #{slid_mlp_forward.1} parent=1 // pred_fallthru
      _
    // Predicated region
    $region22: #{slid_mlp_forward.1} parent=1 // pred_check
      _
    $region23: #{slid_mlp_forward.1} parent=1 // pred_check_branch
      %1138 = sbr.rel (0) target = $region25
    $region24: #{slid_mlp_forward.1} parent=1 // pred_region
      %1140 = dma.done [#allocation4], 32
    $region25: #{slid_mlp_forward.1} parent=1 // pred_fallthru
      _
    %1141 = vsyncpa [#allocation3], 1
    %1142 = vsyncpa [#allocation4], 1

</llo_original>
